<compile_context>
chip_gen: v5e
topology: v5e:2x2
jax: 0.10.0
libtpu: 0.0.40
codegen_flags: <defaults>
</compile_context>

<pallas_src>
import functools

import jax
import jax.numpy as jnp
from jax.experimental import pallas as pl
from jax.experimental.pallas import tpu as pltpu

LRELU_SLOPE = 0.2
BN_EPS = 1e-5
LANE = 128
SUBLANE = 8
MIB = 1024 * 1024


# ------------------------------ small helpers -------------------------------

def _round_up(x, m):
    return (x + m - 1) // m * m


def _pad2d(x, rows, cols):
    r, c = x.shape
    if r == rows and c == cols:
        return x
    return jnp.pad(x, ((0, rows - r), (0, cols - c)))


def _pick_tm(m):
    if m >= 512:
        return 512
    if m >= 256:
        return 256
    return _round_up(m, 16)


def _pick_tk(k_pad):
    if k_pad <= 2048:
        return k_pad                       # single K step: no scratch needed
    for t in (2048, 1024, 512, 256, 128):
        if k_pad % t == 0:
            return t
    return k_pad


def _pick_tn(n_pad):
    if n_pad <= 1024:
        return n_pad                       # single N tile: A streamed once
    for t in (512, 256, 128):
        if n_pad % t == 0:
            return t
    return n_pad


def _vmem_limit(tile_bytes):
    # Enough for the tiles (+margin), never more than 32 MiB (v7x-safe).
    return int(min(32 * MIB, max(16 * MIB, tile_bytes + 8 * MIB)))


def _lrelu(x):
    return jnp.where(x > 0, x, LRELU_SLOPE * x)


def _stats_rows(y):
    """Per-column sum / sum-of-squares packed into (8, tn) blocks (row 0)."""
    tn = y.shape[1]
    s1 = jnp.sum(y, axis=0, keepdims=True)
    s2 = jnp.sum(y * y, axis=0, keepdims=True)
    rows = jax.lax.broadcasted_iota(jnp.int32, (SUBLANE, tn), 0)
    return jnp.where(rows == 0, s1, 0.0), jnp.where(rows == 0, s2, 0.0)


# ----------------------------- Pallas kernels -------------------------------

def _mm_lrelu_1k_kernel(a_ref, b_ref, y_ref, *, apply_lrelu):
    """Single-K-step matmul with optional fused LeakyReLU."""
    y = jnp.dot(a_ref[...], b_ref[...], preferred_element_type=jnp.float32)
    if apply_lrelu:
        y = _lrelu(y)
    y_ref[...] = y.astype(y_ref.dtype)


def _mm_lrelu_kernel(a_ref, b_ref, y_ref, acc_ref, *, apply_lrelu):
    """K-tiled matmul; grid = (Mi, Nj, Kk); LeakyReLU fused in the finalize."""
    k = pl.program_id(2)

    @pl.when(k == 0)
    def _init():
        acc_ref[...] = jnp.zeros_like(acc_ref)

    acc_ref[...] += jnp.dot(a_ref[...], b_ref[...],
                            preferred_element_type=jnp.float32)

    @pl.when(k == pl.num_programs(2) - 1)
    def _finish():
        y = acc_ref[...]
        if apply_lrelu:
            y = _lrelu(y)
        y_ref[...] = y.astype(y_ref.dtype)


def _mm_stats_1k_kernel(a_ref, b_ref, y_ref, s1_ref, s2_ref):
    """Single-K-step matmul emitting bf16 pre-BN output + per-tile BN stats."""
    y = jnp.dot(a_ref[...], b_ref[...], preferred_element_type=jnp.float32)
    y_ref[...] = y.astype(y_ref.dtype)
    s1, s2 = _stats_rows(y)
    s1_ref[...] = s1
    s2_ref[...] = s2


def _mm_stats_kernel(a_ref, b_ref, y_ref, s1_ref, s2_ref, acc_ref):
    """K-tiled matmul emitting bf16 pre-BN output + per-tile BN stats."""
    k = pl.program_id(2)

    @pl.when(k == 0)
    def _init():
        acc_ref[...] = jnp.zeros_like(acc_ref)

    acc_ref[...] += jnp.dot(a_ref[...], b_ref[...],
                            preferred_element_type=jnp.float32)

    @pl.when(k == pl.num_programs(2) - 1)
    def _finish():
        y = acc_ref[...]
        y_ref[...] = y.astype(y_ref.dtype)
        s1, s2 = _stats_rows(y)
        s1_ref[...] = s1
        s2_ref[...] = s2


def _bn_lrelu_kernel(y_ref, s1_ref, s2_ref, gamma_ref, beta_ref, o_ref, *,
                     inv_count):
    """Training-mode BatchNorm (stats precomputed) + LeakyReLU(0.2)."""
    y = y_ref[...].astype(jnp.float32)
    mean = s1_ref[...] * inv_count
    var = jnp.maximum(s2_ref[...] * inv_count - mean * mean, 0.0)
    inv = jax.lax.rsqrt(var + BN_EPS)
    z = (y - mean) * (inv * gamma_ref[...]) + beta_ref[...]
    o_ref[...] = _lrelu(z).astype(o_ref.dtype)


def _bn_lrelu_linear_kernel(y_ref, s1_ref, s2_ref, gamma_ref, beta_ref,
                            w_ref, o_ref, *, inv_count):
    """BatchNorm + LeakyReLU + fused Linear(C, 1, bias=False) row reduction."""
    y = y_ref[...].astype(jnp.float32)
    mean = s1_ref[...] * inv_count
    var = jnp.maximum(s2_ref[...] * inv_count - mean * mean, 0.0)
    inv = jax.lax.rsqrt(var + BN_EPS)
    z = (y - mean) * (inv * gamma_ref[...]) + beta_ref[...]
    z = _lrelu(z)
    res = jnp.sum(z * w_ref[...], axis=1, keepdims=True)       # (tm, 1)
    o_ref[...] = jnp.broadcast_to(res, o_ref.shape)            # lane-dense store


# ------------------------------ kernel wrappers ------------------------------

def matmul_lrelu(a, b, *, apply_lrelu=True, out_dtype=jnp.bfloat16):
    """(M,K) @ (K,N) with bf16 operands, f32 accumulation, fused LeakyReLU."""
    m, k = a.shape
    k2, n = b.shape
    assert k == k2
    tm = _pick_tm(m)
    m_pad = _round_up(m, tm)
    k_pad = _round_up(k, LANE)
    n_pad = _round_up(n, LANE)
    tk = _pick_tk(k_pad)
    tn = _pick_tn(n_pad)

    a_p = _pad2d(a.astype(jnp.bfloat16), m_pad, k_pad)
    b_p = _pad2d(b.astype(jnp.bfloat16), k_pad, n_pad)

    tile_bytes = 2 * (tm * tk + tk * tn) * 2 + 2 * tm * tn * 2 + tm * tn * 4
    cp = pltpu.CompilerParams
    out_shape = jax.ShapeDtypeStruct((m_pad, n_pad), out_dtype)

    if tk == k_pad:
        out = pl.pallas_call(
            functools.partial(_mm_lrelu_1k_kernel, apply_lrelu=apply_lrelu),
            out_shape=out_shape,
            grid=(m_pad // tm, n_pad // tn),
            in_specs=[pl.BlockSpec((tm, k_pad), lambda i, j: (i, 0)),
                      pl.BlockSpec((k_pad, tn), lambda i, j: (0, j))],
            out_specs=pl.BlockSpec((tm, tn), lambda i, j: (i, j)),
            compiler_params=cp(dimension_semantics=("parallel", "parallel"),
                               vmem_limit_bytes=_vmem_limit(tile_bytes)),
        )(a_p, b_p)
    else:
        out = pl.pallas_call(
            functools.partial(_mm_lrelu_kernel, apply_lrelu=apply_lrelu),
            out_shape=out_shape,
            grid=(m_pad // tm, n_pad // tn, k_pad // tk),
            in_specs=[pl.BlockSpec((tm, tk), lambda i, j, kk: (i, kk)),
                      pl.BlockSpec((tk, tn), lambda i, j, kk: (kk, j))],
            out_specs=pl.BlockSpec((tm, tn), lambda i, j, kk: (i, j)),
            scratch_shapes=[pltpu.VMEM((tm, tn), jnp.float32)],
            compiler_params=cp(
                dimension_semantics=("parallel", "parallel", "arbitrary"),
                vmem_limit_bytes=_vmem_limit(tile_bytes)),
        )(a_p, b_p)
    return out[:m, :n]


def matmul_with_stats(a, b, *, out_dtype=jnp.bfloat16):
    """Conv-as-matmul returning padded bf16 output + per-column sum / sumsq."""
    m, k = a.shape
    k2, n = b.shape
    assert k == k2
    tm = _pick_tm(m)
    m_pad = _round_up(m, tm)
    k_pad = _round_up(k, LANE)
    n_pad = _round_up(n, LANE)
    tk = _pick_tk(k_pad)
    tn = _pick_tn(n_pad)
    m_tiles = m_pad // tm

    a_p = _pad2d(a.astype(jnp.bfloat16), m_pad, k_pad)
    b_p = _pad2d(b.astype(jnp.bfloat16), k_pad, n_pad)

    out_shapes = (
        jax.ShapeDtypeStruct((m_pad, n_pad), out_dtype),
        jax.ShapeDtypeStruct((m_tiles * SUBLANE, n_pad), jnp.float32),
        jax.ShapeDtypeStruct((m_tiles * SUBLANE, n_pad), jnp.float32),
    )
    tile_bytes = (2 * (tm * tk + tk * tn) * 2 + 2 * tm * tn * 2
                  + 4 * SUBLANE * tn * 4 + tm * tn * 4)
    cp = pltpu.CompilerParams

    if tk == k_pad:
        y, ps1, ps2 = pl.pallas_call(
            _mm_stats_1k_kernel,
            out_shape=out_shapes,
            grid=(m_tiles, n_pad // tn),
            in_specs=[pl.BlockSpec((tm, k_pad), lambda i, j: (i, 0)),
                      pl.BlockSpec((k_pad, tn), lambda i, j: (0, j))],
            out_specs=(
                pl.BlockSpec((tm, tn), lambda i, j: (i, j)),
                pl.BlockSpec((SUBLANE, tn), lambda i, j: (i, j)),
                pl.BlockSpec((SUBLANE, tn), lambda i, j: (i, j)),
            ),
            compiler_params=cp(dimension_semantics=("parallel", "parallel"),
                               vmem_limit_bytes=_vmem_limit(tile_bytes)),
        )(a_p, b_p)
    else:
        y, ps1, ps2 = pl.pallas_call(
            _mm_stats_kernel,
            out_shape=out_shapes,
            grid=(m_tiles, n_pad // tn, k_pad // tk),
            in_specs=[pl.BlockSpec((tm, tk), lambda i, j, kk: (i, kk)),
                      pl.BlockSpec((tk, tn), lambda i, j, kk: (kk, j))],
            out_specs=(
                pl.BlockSpec((tm, tn), lambda i, j, kk: (i, j)),
                pl.BlockSpec((SUBLANE, tn), lambda i, j, kk: (i, j)),
                pl.BlockSpec((SUBLANE, tn), lambda i, j, kk: (i, j)),
            ),
            scratch_shapes=[pltpu.VMEM((tm, tn), jnp.float32)],
            compiler_params=cp(
                dimension_semantics=("parallel", "parallel", "arbitrary"),
                vmem_limit_bytes=_vmem_limit(tile_bytes)),
        )(a_p, b_p)

    # Tiny per-M-tile partial stats -> (1, n_pad) totals (cheap XLA reduce).
    s1 = jnp.sum(ps1, axis=0, keepdims=True)
    s2 = jnp.sum(ps2, axis=0, keepdims=True)
    return y, s1, s2


def _bn_tile(m_pad):
    for t in (1024, 512, 256):
        if m_pad % t == 0:
            return t
    return m_pad


def bn_lrelu(y_pad, s1, s2, gamma_pad, beta_pad, m_true,
             out_dtype=jnp.bfloat16):
    m_pad, c_pad = y_pad.shape
    tm = _bn_tile(m_pad)
    vec = pl.BlockSpec((1, c_pad), lambda i: (0, 0))
    tile_bytes = 2 * tm * c_pad * 2 + 2 * tm * c_pad * 2
    return pl.pallas_call(
        functools.partial(_bn_lrelu_kernel, inv_count=1.0 / float(m_true)),
        out_shape=jax.ShapeDtypeStruct((m_pad, c_pad), out_dtype),
        grid=(m_pad // tm,),
        in_specs=[pl.BlockSpec((tm, c_pad), lambda i: (i, 0)),
                  vec, vec, vec, vec],
        out_specs=pl.BlockSpec((tm, c_pad), lambda i: (i, 0)),
        compiler_params=pltpu.CompilerParams(
            dimension_semantics=("parallel",),
            vmem_limit_bytes=_vmem_limit(tile_bytes)),
    )(y_pad, s1, s2, gamma_pad, beta_pad)


def bn_lrelu_linear(y_pad, s1, s2, gamma_pad, beta_pad, w_pad, m_true):
    m_pad, c_pad = y_pad.shape
    tm = _bn_tile(m_pad)
    vec = pl.BlockSpec((1, c_pad), lambda i: (0, 0))
    tile_bytes = 2 * tm * c_pad * 2 + 2 * tm * LANE * 4
    out = pl.pallas_call(
        functools.partial(_bn_lrelu_linear_kernel,
                          inv_count=1.0 / float(m_true)),
        out_shape=jax.ShapeDtypeStruct((m_pad, LANE), jnp.float32),
        grid=(m_pad // tm,),
        in_specs=[pl.BlockSpec((tm, c_pad), lambda i: (i, 0)),
                  vec, vec, vec, vec, vec],
        out_specs=pl.BlockSpec((tm, LANE), lambda i: (i, 0)),
        compiler_params=pltpu.CompilerParams(
            dimension_semantics=("parallel",),
            vmem_limit_bytes=_vmem_limit(tile_bytes)),
    )(y_pad, s1, s2, gamma_pad, beta_pad, w_pad)
    return out[:, :1]


# --------------------------- JAX glue (im2col, NHWC) -------------------------

def im2col_nhwc(x, k=4, s=2, p=1):
    """x: (N, H, W, C) -> patches (N*OH*OW, k*k*C) via 16 strided slices."""
    n, h, w, c = x.shape
    xp = jnp.pad(x, ((0, 0), (p, p), (p, p), (0, 0)))
    oh = (h + 2 * p - k) // s + 1
    ow = (w + 2 * p - k) // s + 1
    cols = []
    for kh in range(k):
        for kw in range(k):
            sl = xp[:, kh:kh + (oh - 1) * s + 1:s,
                    kw:kw + (ow - 1) * s + 1:s, :]
            cols.append(sl.reshape(n * oh * ow, c))
    return jnp.concatenate(cols, axis=1), oh, ow


def conv_w_to_mat(w):
    """PyTorch (Cout, Cin, KH, KW) -> (KH*KW*Cin, Cout), matching im2col cols."""
    cout, cin, kh, kw = w.shape
    return jnp.transpose(w, (2, 3, 1, 0)).reshape(kh * kw * cin, cout)


# ------------------------------- Discriminator -------------------------------

def init_params(key, nc, ndf):
    ks = jax.random.split(key, 5)
    params = {
        "conv1": 0.02 * jax.random.normal(ks[0], (ndf, nc, 4, 4), jnp.float32),
        "conv2": 0.02 * jax.random.normal(ks[1], (ndf * 2, ndf, 4, 4), jnp.float32),
        "conv3": 0.02 * jax.random.normal(ks[2], (ndf * 4, ndf * 2, 4, 4), jnp.float32),
        "conv4": 0.02 * jax.random.normal(ks[3], (ndf * 8, ndf * 4, 4, 4), jnp.float32),
        "linear": 0.02 * jax.random.normal(ks[4], (1, ndf * 8), jnp.float32),
    }
    for idx, c in ((2, ndf * 2), (3, ndf * 4), (4, ndf * 8)):
        params[f"gamma{idx}"] = jnp.ones((c,), jnp.float32)   # BN default init
        params[f"beta{idx}"] = jnp.zeros((c,), jnp.float32)
    return params


def discriminator_forward(x_nchw, params):
    n = x_nchw.shape[0]
    # NHWC, bf16 activations (f32 accumulation / epilogue math in-kernel).
    x = jnp.transpose(x_nchw, (0, 2, 3, 1)).astype(jnp.bfloat16)

    # Layer 1: Conv(nc -> ndf) + LeakyReLU (no BN), LReLU fused in the matmul.
    p, oh, ow = im2col_nhwc(x)
    w1 = conv_w_to_mat(params["conv1"])
    y = matmul_lrelu(p, w1, apply_lrelu=True)
    x = y.reshape(n, oh, ow, w1.shape[1])

    # Layers 2-4: Conv + BatchNorm(training stats, biased var) + LeakyReLU.
    for idx in (2, 3, 4):
        wm = conv_w_to_mat(params[f"conv{idx}"])
        cout = wm.shape[1]
        p, oh, ow = im2col_nhwc(x)
        m_true = p.shape[0]                       # N * OH * OW (per-channel count)
        y_pad, s1, s2 = matmul_with_stats(p, wm)
        c_pad = y_pad.shape[1]
        gamma = _pad2d(params[f"gamma{idx}"].reshape(1, -1), 1, c_pad)
        beta = _pad2d(params[f"beta{idx}"].reshape(1, -1), 1, c_pad)

        if idx < 4:
            a = bn_lrelu(y_pad, s1, s2, gamma, beta, m_true)
            x = a[:m_true, :cout].reshape(n, oh, ow, cout)
        else:
            # output.view(-1, ndf*8) then Linear(ndf*8, 1, bias=False),
            # fused into the final BN/LReLU pass (valid since spatial is 1x1).
            assert oh == 1 and ow == 1, "expect 1x1 final feature map (16x16 input)"
            # TODO(synk): general spatial>1 final flatten (NCHW view) not fused.
            w_lin = _pad2d(params["linear"].reshape(1, -1), 1, c_pad)
            out = bn_lrelu_linear(y_pad, s1, s2, gamma, beta, w_lin, m_true)
            return out[:m_true]


if __name__ == "__main__":
    # Small shapes consistent with the module: 4 stride-2 convs => 16x16 -> 1x1.
    batch, nc, ndf, spatial = 2, 4, 8, 16

    key = jax.random.PRNGKey(0)
    k_x, k_p = jax.random.split(key)
    x = jax.random.normal(k_x, (batch, nc, spatial, spatial), jnp.float32)
    params = init_params(k_p, nc, ndf)

    fwd = jax.jit(discriminator_forward)
    out = jax.block_until_ready(fwd(x, params))
    assert out.shape == (batch, 1), out.shape
    assert bool(jnp.all(jnp.isfinite(out)))
    print("KERNEL_OK")
</pallas_src>

<mosaic_0001>
module attributes {stable_mosaic.version = 11 : i64} {
  func.func @_mm_lrelu_1k_kernel(%arg0: i32, %arg1: i32, %arg2: memref<128x128xbf16, #tpu.memory_space<vmem>>, %arg3: memref<128x128xbf16, #tpu.memory_space<vmem>>, %arg4: memref<128x128xbf16, #tpu.memory_space<vmem>>) attributes {dimension_semantics = [#tpu.dimension_semantics<parallel>, #tpu.dimension_semantics<parallel>], iteration_bounds = array<i64: 1, 1>, scalar_prefetch = 0 : i64, scratch_operands = 0 : i64, tpu.core_type = #tpu.core_type<tc>, window_params = [{transform_indices = @transform_0, window_bounds = array<i64: 128, 128>}, {transform_indices = @transform_1, window_bounds = array<i64: 128, 128>}, {transform_indices = @transform_2, window_bounds = array<i64: 128, 128>}]} {
    %c0 = arith.constant 0 : index
    %c0_0 = arith.constant 0 : index
    %0 = vector.load %arg2[%c0, %c0_0] : memref<128x128xbf16, #tpu.memory_space<vmem>>, vector<128x128xbf16>
    %c0_1 = arith.constant 0 : index
    %c0_2 = arith.constant 0 : index
    %1 = vector.load %arg3[%c0_1, %c0_2] : memref<128x128xbf16, #tpu.memory_space<vmem>>, vector<128x128xbf16>
    %cst = arith.constant dense<0.000000e+00> : vector<128x128xf32>
    %2 = tpu.matmul %0, %1, %cst {dimension_numbers = #tpu.dot_dimension_numbers<[1], [0], [0], [1], [0, 0, 1, 1], [], []>} : vector<128x128xbf16>, vector<128x128xbf16>, vector<128x128xf32> -> vector<128x128xf32>
    %cst_3 = arith.constant 0.000000e+00 : f32
    %3 = vector.broadcast %cst_3 : f32 to vector<128x128xf32>
    %4 = arith.cmpf ogt, %2, %3 : vector<128x128xf32>
    %cst_4 = arith.constant 2.000000e-01 : f32
    %5 = vector.broadcast %cst_4 : f32 to vector<128x128xf32>
    %6 = arith.mulf %5, %2 : vector<128x128xf32>
    %7 = arith.select %4, %2, %6 : vector<128x128xi1>, vector<128x128xf32>
    %8 = arith.truncf %7 : vector<128x128xf32> to vector<128x128xbf16>
    %c0_5 = arith.constant 0 : index
    %c0_6 = arith.constant 0 : index
    %9 = vector.load %arg4[%c0_5, %c0_6] : memref<128x128xbf16, #tpu.memory_space<vmem>>, vector<128x128xbf16>
    tpu.vector_store %arg4[%c0_5, %c0_6], %8 {strides = array<i32>} : memref<128x128xbf16, #tpu.memory_space<vmem>>, vector<128x128xbf16>,
    return
  }
  func.func @transform_0(%arg0: i32, %arg1: i32) -> (i32, i32) {
    %c0_i32 = arith.constant 0 : i32
    %c0_i32_0 = arith.constant 0 : i32
    return %arg0, %c0_i32 : i32, i32
  }
  func.func @transform_1(%arg0: i32, %arg1: i32) -> (i32, i32) {
    %c0_i32 = arith.constant 0 : i32
    %c0_i32_0 = arith.constant 0 : i32
    return %c0_i32, %arg1 : i32, i32
  }
  func.func @transform_2(%arg0: i32, %arg1: i32) -> (i32, i32) {
    %c0_i32 = arith.constant 0 : i32
    return %arg0, %arg1 : i32, i32
  }
}

module attributes {stable_mosaic.version = 11 : i64} {
  func.func @_mm_stats_1k_kernel(%arg0: i32, %arg1: i32, %arg2: memref<32x128xbf16, #tpu.memory_space<vmem>>, %arg3: memref<128x128xbf16, #tpu.memory_space<vmem>>, %arg4: memref<32x128xbf16, #tpu.memory_space<vmem>>, %arg5: memref<8x128xf32, #tpu.memory_space<vmem>>, %arg6: memref<8x128xf32, #tpu.memory_space<vmem>>) attributes {dimension_semantics = [#tpu.dimension_semantics<parallel>, #tpu.dimension_semantics<parallel>], iteration_bounds = array<i64: 1, 1>, scalar_prefetch = 0 : i64, scratch_operands = 0 : i64, tpu.core_type = #tpu.core_type<tc>, window_params = [{transform_indices = @transform_0, window_bounds = array<i64: 32, 128>}, {transform_indices = @transform_1, window_bounds = array<i64: 128, 128>}, {transform_indices = @transform_2, window_bounds = array<i64: 32, 128>}, {transform_indices = @transform_3, window_bounds = array<i64: 8, 128>}, {transform_indices = @transform_4, window_bounds = array<i64: 8, 128>}]} {
    %c0 = arith.constant 0 : index
    %c0_0 = arith.constant 0 : index
    %0 = vector.load %arg2[%c0, %c0_0] : memref<32x128xbf16, #tpu.memory_space<vmem>>, vector<32x128xbf16>
    %c0_1 = arith.constant 0 : index
    %c0_2 = arith.constant 0 : index
    %1 = vector.load %arg3[%c0_1, %c0_2] : memref<128x128xbf16, #tpu.memory_space<vmem>>, vector<128x128xbf16>
    %cst = arith.constant dense<0.000000e+00> : vector<32x128xf32>
    %2 = tpu.matmul %0, %1, %cst {dimension_numbers = #tpu.dot_dimension_numbers<[1], [0], [0], [1], [0, 0, 1, 1], [], []>} : vector<32x128xbf16>, vector<128x128xbf16>, vector<32x128xf32> -> vector<32x128xf32>
    %3 = arith.truncf %2 : vector<32x128xf32> to vector<32x128xbf16>
    %c0_3 = arith.constant 0 : index
    %c0_4 = arith.constant 0 : index
    %4 = vector.load %arg4[%c0_3, %c0_4] : memref<32x128xbf16, #tpu.memory_space<vmem>>, vector<32x128xbf16>
    tpu.vector_store %arg4[%c0_3, %c0_4], %3 {strides = array<i32>} : memref<32x128xbf16, #tpu.memory_space<vmem>>, vector<32x128xbf16>,
    %cst_5 = arith.constant dense<0.000000e+00> : vector<128xf32>
    %5 = vector.multi_reduction <add>, %2, %cst_5 [0] : vector<32x128xf32> to vector<128xf32>
    %6 = vector.shape_cast %5 : vector<128xf32> to vector<1x128xf32>
    %7 = arith.mulf %2, %2 : vector<32x128xf32>
    %cst_6 = arith.constant dense<0.000000e+00> : vector<128xf32>
    %8 = vector.multi_reduction <add>, %7, %cst_6 [0] : vector<32x128xf32> to vector<128xf32>
    %9 = vector.shape_cast %8 : vector<128xf32> to vector<1x128xf32>
    %10 = tpu.iota {dimensions = array<i32: 0>} : vector<8x128xi32>
    %c0_i32 = arith.constant 0 : i32
    %11 = vector.broadcast %c0_i32 : i32 to vector<8x128xi32>
    %12 = arith.cmpi eq, %10, %11 : vector<8x128xi32>
    %cst_7 = arith.constant 0.000000e+00 : f32
    %13 = vector.shape_cast %6 : vector<1x128xf32> to vector<1x128xf32>
    %14 = vector.broadcast %13 : vector<1x128xf32> to vector<8x128xf32>
    %15 = vector.broadcast %cst_7 : f32 to vector<8x128xf32>
    %16 = arith.select %12, %14, %15 : vector<8x128xi1>, vector<8x128xf32>
    %c0_i32_8 = arith.constant 0 : i32
    %17 = vector.broadcast %c0_i32_8 : i32 to vector<8x128xi32>
    %18 = arith.cmpi eq, %10, %17 : vector<8x128xi32>
    %cst_9 = arith.constant 0.000000e+00 : f32
    %19 = vector.shape_cast %9 : vector<1x128xf32> to vector<1x128xf32>
    %20 = vector.broadcast %19 : vector<1x128xf32> to vector<8x128xf32>
    %21 = vector.broadcast %cst_9 : f32 to vector<8x128xf32>
    %22 = arith.select %18, %20, %21 : vector<8x128xi1>, vector<8x128xf32>
    %c0_10 = arith.constant 0 : index
    %c0_11 = arith.constant 0 : index
    %23 = vector.load %arg5[%c0_10, %c0_11] : memref<8x128xf32, #tpu.memory_space<vmem>>, vector<8x128xf32>
    tpu.vector_store %arg5[%c0_10, %c0_11], %16 {strides = array<i32>} : memref<8x128xf32, #tpu.memory_space<vmem>>, vector<8x128xf32>,
    %c0_12 = arith.constant 0 : index
    %c0_13 = arith.constant 0 : index
    %24 = vector.load %arg6[%c0_12, %c0_13] : memref<8x128xf32, #tpu.memory_space<vmem>>, vector<8x128xf32>
    tpu.vector_store %arg6[%c0_12, %c0_13], %22 {strides = array<i32>} : memref<8x128xf32, #tpu.memory_space<vmem>>, vector<8x128xf32>,
    return
  }
  func.func @transform_0(%arg0: i32, %arg1: i32) -> (i32, i32) {
    %c0_i32 = arith.constant 0 : i32
    %c0_i32_0 = arith.constant 0 : i32
    return %arg0, %c0_i32 : i32, i32
  }
  func.func @transform_1(%arg0: i32, %arg1: i32) -> (i32, i32) {
    %c0_i32 = arith.constant 0 : i32
    %c0_i32_0 = arith.constant 0 : i32
    return %c0_i32, %arg1 : i32, i32
  }
  func.func @transform_2(%arg0: i32, %arg1: i32) -> (i32, i32) {
    %c0_i32 = arith.constant 0 : i32
    return %arg0, %arg1 : i32, i32
  }
  func.func @transform_3(%arg0: i32, %arg1: i32) -> (i32, i32) {
    %c0_i32 = arith.constant 0 : i32
    return %arg0, %arg1 : i32, i32
  }
  func.func @transform_4(%arg0: i32, %arg1: i32) -> (i32, i32) {
    %c0_i32 = arith.constant 0 : i32
    return %arg0, %arg1 : i32, i32
  }
}

module attributes {stable_mosaic.version = 11 : i64} {
  func.func @_bn_lrelu_kernel(%arg0: i32, %arg1: memref<32x128xbf16, #tpu.memory_space<vmem>>, %arg2: memref<1x128xf32, #tpu.memory_space<vmem>>, %arg3: memref<1x128xf32, #tpu.memory_space<vmem>>, %arg4: memref<1x128xf32, #tpu.memory_space<vmem>>, %arg5: memref<1x128xf32, #tpu.memory_space<vmem>>, %arg6: memref<32x128xbf16, #tpu.memory_space<vmem>>) attributes {dimension_semantics = [#tpu.dimension_semantics<parallel>], iteration_bounds = array<i64: 1>, scalar_prefetch = 0 : i64, scratch_operands = 0 : i64, tpu.core_type = #tpu.core_type<tc>, window_params = [{transform_indices = @transform_0, window_bounds = array<i64: 32, 128>}, {pipeline_mode = #tpu.pipeline_mode<synchronous>, transform_indices = @transform_1, window_bounds = array<i64: 1, 128>}, {pipeline_mode = #tpu.pipeline_mode<synchronous>, transform_indices = @transform_2, window_bounds = array<i64: 1, 128>}, {pipeline_mode = #tpu.pipeline_mode<synchronous>, transform_indices = @transform_3, window_bounds = array<i64: 1, 128>}, {pipeline_mode = #tpu.pipeline_mode<synchronous>, transform_indices = @transform_4, window_bounds = array<i64: 1, 128>}, {transform_indices = @transform_5, window_bounds = array<i64: 32, 128>}]} {
    %c0 = arith.constant 0 : index
    %c0_0 = arith.constant 0 : index
    %0 = vector.load %arg1[%c0, %c0_0] : memref<32x128xbf16, #tpu.memory_space<vmem>>, vector<32x128xbf16>
    %1 = arith.extf %0 : vector<32x128xbf16> to vector<32x128xf32>
    %c0_1 = arith.constant 0 : index
    %c0_2 = arith.constant 0 : index
    %2 = vector.load %arg2[%c0_1, %c0_2] : memref<1x128xf32, #tpu.memory_space<vmem>>, vector<1x128xf32>
    %cst = arith.constant 3.125000e-02 : f32
    %3 = vector.broadcast %cst : f32 to vector<1x128xf32>
    %4 = arith.mulf %2, %3 : vector<1x128xf32>
    %c0_3 = arith.constant 0 : index
    %c0_4 = arith.constant 0 : index
    %5 = vector.load %arg3[%c0_3, %c0_4] : memref<1x128xf32, #tpu.memory_space<vmem>>, vector<1x128xf32>
    %cst_5 = arith.constant 3.125000e-02 : f32
    %6 = vector.broadcast %cst_5 : f32 to vector<1x128xf32>
    %7 = arith.mulf %5, %6 : vector<1x128xf32>
    %8 = arith.mulf %4, %4 : vector<1x128xf32>
    %9 = arith.subf %7, %8 : vector<1x128xf32>
    %cst_6 = arith.constant 0.000000e+00 : f32
    %10 = vector.broadcast %cst_6 : f32 to vector<1x128xf32>
    %11 = arith.maximumf %9, %10 : vector<1x128xf32>
    %cst_7 = arith.constant 9.99999974E-6 : f32
    %12 = vector.broadcast %cst_7 : f32 to vector<1x128xf32>
    %13 = arith.addf %11, %12 : vector<1x128xf32>
    %14 = math.rsqrt %13 : vector<1x128xf32>
    %15 = vector.broadcast %4 : vector<1x128xf32> to vector<32x128xf32>
    %16 = arith.subf %1, %15 : vector<32x128xf32>
    %c0_8 = arith.constant 0 : index
    %c0_9 = arith.constant 0 : index
    %17 = vector.load %arg4[%c0_8, %c0_9] : memref<1x128xf32, #tpu.memory_space<vmem>>, vector<1x128xf32>
    %18 = arith.mulf %14, %17 : vector<1x128xf32>
    %19 = vector.broadcast %18 : vector<1x128xf32> to vector<32x128xf32>
    %20 = arith.mulf %16, %19 : vector<32x128xf32>
    %c0_10 = arith.constant 0 : index
    %c0_11 = arith.constant 0 : index
    %21 = vector.load %arg5[%c0_10, %c0_11] : memref<1x128xf32, #tpu.memory_space<vmem>>, vector<1x128xf32>
    %22 = vector.broadcast %21 : vector<1x128xf32> to vector<32x128xf32>
    %23 = arith.addf %20, %22 : vector<32x128xf32>
    %cst_12 = arith.constant 0.000000e+00 : f32
    %24 = vector.broadcast %cst_12 : f32 to vector<32x128xf32>
    %25 = arith.cmpf ogt, %23, %24 : vector<32x128xf32>
    %cst_13 = arith.constant 2.000000e-01 : f32
    %26 = vector.broadcast %cst_13 : f32 to vector<32x128xf32>
    %27 = arith.mulf %26, %23 : vector<32x128xf32>
    %28 = arith.select %25, %23, %27 : vector<32x128xi1>, vector<32x128xf32>
    %29 = arith.truncf %28 : vector<32x128xf32> to vector<32x128xbf16>
    %c0_14 = arith.constant 0 : index
    %c0_15 = arith.constant 0 : index
    %30 = vector.load %arg6[%c0_14, %c0_15] : memref<32x128xbf16, #tpu.memory_space<vmem>>, vector<32x128xbf16>
    tpu.vector_store %arg6[%c0_14, %c0_15], %29 {strides = array<i32>} : memref<32x128xbf16, #tpu.memory_space<vmem>>, vector<32x128xbf16>,
    return
  }
  func.func @transform_0(%arg0: i32) -> (i32, i32) {
    %c0_i32 = arith.constant 0 : i32
    %c0_i32_0 = arith.constant 0 : i32
    return %arg0, %c0_i32 : i32, i32
  }
  func.func @transform_1(%arg0: i32) -> (i32, i32) {
    %c0_i32 = arith.constant 0 : i32
    %c0_i32_0 = arith.constant 0 : i32
    %c0_i32_1 = arith.constant 0 : i32
    return %c0_i32, %c0_i32_0 : i32, i32
  }
  func.func @transform_2(%arg0: i32) -> (i32, i32) {
    %c0_i32 = arith.constant 0 : i32
    %c0_i32_0 = arith.constant 0 : i32
    %c0_i32_1 = arith.constant 0 : i32
    return %c0_i32, %c0_i32_0 : i32, i32
  }
  func.func @transform_3(%arg0: i32) -> (i32, i32) {
    %c0_i32 = arith.constant 0 : i32
    %c0_i32_0 = arith.constant 0 : i32
    %c0_i32_1 = arith.constant 0 : i32
    return %c0_i32, %c0_i32_0 : i32, i32
  }
  func.func @transform_4(%arg0: i32) -> (i32, i32) {
    %c0_i32 = arith.constant 0 : i32
    %c0_i32_0 = arith.constant 0 : i32
    %c0_i32_1 = arith.constant 0 : i32
    return %c0_i32, %c0_i32_0 : i32, i32
  }
  func.func @transform_5(%arg0: i32) -> (i32, i32) {
    %c0_i32 = arith.constant 0 : i32
    %c0_i32_0 = arith.constant 0 : i32
    return %arg0, %c0_i32 : i32, i32
  }
}

module attributes {stable_mosaic.version = 11 : i64} {
  func.func @_mm_stats_1k_kernel(%arg0: i32, %arg1: i32, %arg2: memref<16x256xbf16, #tpu.memory_space<vmem>>, %arg3: memref<256x128xbf16, #tpu.memory_space<vmem>>, %arg4: memref<16x128xbf16, #tpu.memory_space<vmem>>, %arg5: memref<8x128xf32, #tpu.memory_space<vmem>>, %arg6: memref<8x128xf32, #tpu.memory_space<vmem>>) attributes {dimension_semantics = [#tpu.dimension_semantics<parallel>, #tpu.dimension_semantics<parallel>], iteration_bounds = array<i64: 1, 1>, scalar_prefetch = 0 : i64, scratch_operands = 0 : i64, tpu.core_type = #tpu.core_type<tc>, window_params = [{transform_indices = @transform_0, window_bounds = array<i64: 16, 256>}, {transform_indices = @transform_1, window_bounds = array<i64: 256, 128>}, {transform_indices = @transform_2, window_bounds = array<i64: 16, 128>}, {transform_indices = @transform_3, window_bounds = array<i64: 8, 128>}, {transform_indices = @transform_4, window_bounds = array<i64: 8, 128>}]} {
    %c0 = arith.constant 0 : index
    %c0_0 = arith.constant 0 : index
    %0 = vector.load %arg2[%c0, %c0_0] : memref<16x256xbf16, #tpu.memory_space<vmem>>, vector<16x256xbf16>
    %c0_1 = arith.constant 0 : index
    %c0_2 = arith.constant 0 : index
    %1 = vector.load %arg3[%c0_1, %c0_2] : memref<256x128xbf16, #tpu.memory_space<vmem>>, vector<256x128xbf16>
    %cst = arith.constant dense<0.000000e+00> : vector<16x128xf32>
    %2 = tpu.matmul %0, %1, %cst {dimension_numbers = #tpu.dot_dimension_numbers<[1], [0], [0], [1], [0, 0, 1, 1], [], []>} : vector<16x256xbf16>, vector<256x128xbf16>, vector<16x128xf32> -> vector<16x128xf32>
    %3 = arith.truncf %2 : vector<16x128xf32> to vector<16x128xbf16>
    %c0_3 = arith.constant 0 : index
    %c0_4 = arith.constant 0 : index
    %4 = vector.load %arg4[%c0_3, %c0_4] : memref<16x128xbf16, #tpu.memory_space<vmem>>, vector<16x128xbf16>
    tpu.vector_store %arg4[%c0_3, %c0_4], %3 {strides = array<i32>} : memref<16x128xbf16, #tpu.memory_space<vmem>>, vector<16x128xbf16>,
    %cst_5 = arith.constant dense<0.000000e+00> : vector<128xf32>
    %5 = vector.multi_reduction <add>, %2, %cst_5 [0] : vector<16x128xf32> to vector<128xf32>
    %6 = vector.shape_cast %5 : vector<128xf32> to vector<1x128xf32>
    %7 = arith.mulf %2, %2 : vector<16x128xf32>
    %cst_6 = arith.constant dense<0.000000e+00> : vector<128xf32>
    %8 = vector.multi_reduction <add>, %7, %cst_6 [0] : vector<16x128xf32> to vector<128xf32>
    %9 = vector.shape_cast %8 : vector<128xf32> to vector<1x128xf32>
    %10 = tpu.iota {dimensions = array<i32: 0>} : vector<8x128xi32>
    %c0_i32 = arith.constant 0 : i32
    %11 = vector.broadcast %c0_i32 : i32 to vector<8x128xi32>
    %12 = arith.cmpi eq, %10, %11 : vector<8x128xi32>
    %cst_7 = arith.constant 0.000000e+00 : f32
    %13 = vector.shape_cast %6 : vector<1x128xf32> to vector<1x128xf32>
    %14 = vector.broadcast %13 : vector<1x128xf32> to vector<8x128xf32>
    %15 = vector.broadcast %cst_7 : f32 to vector<8x128xf32>
    %16 = arith.select %12, %14, %15 : vector<8x128xi1>, vector<8x128xf32>
    %c0_i32_8 = arith.constant 0 : i32
    %17 = vector.broadcast %c0_i32_8 : i32 to vector<8x128xi32>
    %18 = arith.cmpi eq, %10, %17 : vector<8x128xi32>
    %cst_9 = arith.constant 0.000000e+00 : f32
    %19 = vector.shape_cast %9 : vector<1x128xf32> to vector<1x128xf32>
    %20 = vector.broadcast %19 : vector<1x128xf32> to vector<8x128xf32>
    %21 = vector.broadcast %cst_9 : f32 to vector<8x128xf32>
    %22 = arith.select %18, %20, %21 : vector<8x128xi1>, vector<8x128xf32>
    %c0_10 = arith.constant 0 : index
    %c0_11 = arith.constant 0 : index
    %23 = vector.load %arg5[%c0_10, %c0_11] : memref<8x128xf32, #tpu.memory_space<vmem>>, vector<8x128xf32>
    tpu.vector_store %arg5[%c0_10, %c0_11], %16 {strides = array<i32>} : memref<8x128xf32, #tpu.memory_space<vmem>>, vector<8x128xf32>,
    %c0_12 = arith.constant 0 : index
    %c0_13 = arith.constant 0 : index
    %24 = vector.load %arg6[%c0_12, %c0_13] : memref<8x128xf32, #tpu.memory_space<vmem>>, vector<8x128xf32>
    tpu.vector_store %arg6[%c0_12, %c0_13], %22 {strides = array<i32>} : memref<8x128xf32, #tpu.memory_space<vmem>>, vector<8x128xf32>,
    return
  }
  func.func @transform_0(%arg0: i32, %arg1: i32) -> (i32, i32) {
    %c0_i32 = arith.constant 0 : i32
    %c0_i32_0 = arith.constant 0 : i32
    return %arg0, %c0_i32 : i32, i32
  }
  func.func @transform_1(%arg0: i32, %arg1: i32) -> (i32, i32) {
    %c0_i32 = arith.constant 0 : i32
    %c0_i32_0 = arith.constant 0 : i32
    return %c0_i32, %arg1 : i32, i32
  }
  func.func @transform_2(%arg0: i32, %arg1: i32) -> (i32, i32) {
    %c0_i32 = arith.constant 0 : i32
    return %arg0, %arg1 : i32, i32
  }
  func.func @transform_3(%arg0: i32, %arg1: i32) -> (i32, i32) {
    %c0_i32 = arith.constant 0 : i32
    return %arg0, %arg1 : i32, i32
  }
  func.func @transform_4(%arg0: i32, %arg1: i32) -> (i32, i32) {
    %c0_i32 = arith.constant 0 : i32
    return %arg0, %arg1 : i32, i32
  }
}

module attributes {stable_mosaic.version = 11 : i64} {
  func.func @_bn_lrelu_kernel(%arg0: i32, %arg1: memref<16x128xbf16, #tpu.memory_space<vmem>>, %arg2: memref<1x128xf32, #tpu.memory_space<vmem>>, %arg3: memref<1x128xf32, #tpu.memory_space<vmem>>, %arg4: memref<1x128xf32, #tpu.memory_space<vmem>>, %arg5: memref<1x128xf32, #tpu.memory_space<vmem>>, %arg6: memref<16x128xbf16, #tpu.memory_space<vmem>>) attributes {dimension_semantics = [#tpu.dimension_semantics<parallel>], iteration_bounds = array<i64: 1>, scalar_prefetch = 0 : i64, scratch_operands = 0 : i64, tpu.core_type = #tpu.core_type<tc>, window_params = [{transform_indices = @transform_0, window_bounds = array<i64: 16, 128>}, {pipeline_mode = #tpu.pipeline_mode<synchronous>, transform_indices = @transform_1, window_bounds = array<i64: 1, 128>}, {pipeline_mode = #tpu.pipeline_mode<synchronous>, transform_indices = @transform_2, window_bounds = array<i64: 1, 128>}, {pipeline_mode = #tpu.pipeline_mode<synchronous>, transform_indices = @transform_3, window_bounds = array<i64: 1, 128>}, {pipeline_mode = #tpu.pipeline_mode<synchronous>, transform_indices = @transform_4, window_bounds = array<i64: 1, 128>}, {transform_indices = @transform_5, window_bounds = array<i64: 16, 128>}]} {
    %c0 = arith.constant 0 : index
    %c0_0 = arith.constant 0 : index
    %0 = vector.load %arg1[%c0, %c0_0] : memref<16x128xbf16, #tpu.memory_space<vmem>>, vector<16x128xbf16>
    %1 = arith.extf %0 : vector<16x128xbf16> to vector<16x128xf32>
    %c0_1 = arith.constant 0 : index
    %c0_2 = arith.constant 0 : index
    %2 = vector.load %arg2[%c0_1, %c0_2] : memref<1x128xf32, #tpu.memory_space<vmem>>, vector<1x128xf32>
    %cst = arith.constant 1.250000e-01 : f32
    %3 = vector.broadcast %cst : f32 to vector<1x128xf32>
    %4 = arith.mulf %2, %3 : vector<1x128xf32>
    %c0_3 = arith.constant 0 : index
    %c0_4 = arith.constant 0 : index
    %5 = vector.load %arg3[%c0_3, %c0_4] : memref<1x128xf32, #tpu.memory_space<vmem>>, vector<1x128xf32>
    %cst_5 = arith.constant 1.250000e-01 : f32
    %6 = vector.broadcast %cst_5 : f32 to vector<1x128xf32>
    %7 = arith.mulf %5, %6 : vector<1x128xf32>
    %8 = arith.mulf %4, %4 : vector<1x128xf32>
    %9 = arith.subf %7, %8 : vector<1x128xf32>
    %cst_6 = arith.constant 0.000000e+00 : f32
    %10 = vector.broadcast %cst_6 : f32 to vector<1x128xf32>
    %11 = arith.maximumf %9, %10 : vector<1x128xf32>
    %cst_7 = arith.constant 9.99999974E-6 : f32
    %12 = vector.broadcast %cst_7 : f32 to vector<1x128xf32>
    %13 = arith.addf %11, %12 : vector<1x128xf32>
    %14 = math.rsqrt %13 : vector<1x128xf32>
    %15 = vector.broadcast %4 : vector<1x128xf32> to vector<16x128xf32>
    %16 = arith.subf %1, %15 : vector<16x128xf32>
    %c0_8 = arith.constant 0 : index
    %c0_9 = arith.constant 0 : index
    %17 = vector.load %arg4[%c0_8, %c0_9] : memref<1x128xf32, #tpu.memory_space<vmem>>, vector<1x128xf32>
    %18 = arith.mulf %14, %17 : vector<1x128xf32>
    %19 = vector.broadcast %18 : vector<1x128xf32> to vector<16x128xf32>
    %20 = arith.mulf %16, %19 : vector<16x128xf32>
    %c0_10 = arith.constant 0 : index
    %c0_11 = arith.constant 0 : index
    %21 = vector.load %arg5[%c0_10, %c0_11] : memref<1x128xf32, #tpu.memory_space<vmem>>, vector<1x128xf32>
    %22 = vector.broadcast %21 : vector<1x128xf32> to vector<16x128xf32>
    %23 = arith.addf %20, %22 : vector<16x128xf32>
    %cst_12 = arith.constant 0.000000e+00 : f32
    %24 = vector.broadcast %cst_12 : f32 to vector<16x128xf32>
    %25 = arith.cmpf ogt, %23, %24 : vector<16x128xf32>
    %cst_13 = arith.constant 2.000000e-01 : f32
    %26 = vector.broadcast %cst_13 : f32 to vector<16x128xf32>
    %27 = arith.mulf %26, %23 : vector<16x128xf32>
    %28 = arith.select %25, %23, %27 : vector<16x128xi1>, vector<16x128xf32>
    %29 = arith.truncf %28 : vector<16x128xf32> to vector<16x128xbf16>
    %c0_14 = arith.constant 0 : index
    %c0_15 = arith.constant 0 : index
    %30 = vector.load %arg6[%c0_14, %c0_15] : memref<16x128xbf16, #tpu.memory_space<vmem>>, vector<16x128xbf16>
    tpu.vector_store %arg6[%c0_14, %c0_15], %29 {strides = array<i32>} : memref<16x128xbf16, #tpu.memory_space<vmem>>, vector<16x128xbf16>,
    return
  }
  func.func @transform_0(%arg0: i32) -> (i32, i32) {
    %c0_i32 = arith.constant 0 : i32
    %c0_i32_0 = arith.constant 0 : i32
    return %arg0, %c0_i32 : i32, i32
  }
  func.func @transform_1(%arg0: i32) -> (i32, i32) {
    %c0_i32 = arith.constant 0 : i32
    %c0_i32_0 = arith.constant 0 : i32
    %c0_i32_1 = arith.constant 0 : i32
    return %c0_i32, %c0_i32_0 : i32, i32
  }
  func.func @transform_2(%arg0: i32) -> (i32, i32) {
    %c0_i32 = arith.constant 0 : i32
    %c0_i32_0 = arith.constant 0 : i32
    %c0_i32_1 = arith.constant 0 : i32
    return %c0_i32, %c0_i32_0 : i32, i32
  }
  func.func @transform_3(%arg0: i32) -> (i32, i32) {
    %c0_i32 = arith.constant 0 : i32
    %c0_i32_0 = arith.constant 0 : i32
    %c0_i32_1 = arith.constant 0 : i32
    return %c0_i32, %c0_i32_0 : i32, i32
  }
  func.func @transform_4(%arg0: i32) -> (i32, i32) {
    %c0_i32 = arith.constant 0 : i32
    %c0_i32_0 = arith.constant 0 : i32
    %c0_i32_1 = arith.constant 0 : i32
    return %c0_i32, %c0_i32_0 : i32, i32
  }
  func.func @transform_5(%arg0: i32) -> (i32, i32) {
    %c0_i32 = arith.constant 0 : i32
    %c0_i32_0 = arith.constant 0 : i32
    return %arg0, %c0_i32 : i32, i32
  }
}

module attributes {stable_mosaic.version = 11 : i64} {
  func.func @_mm_stats_1k_kernel(%arg0: i32, %arg1: i32, %arg2: memref<16x512xbf16, #tpu.memory_space<vmem>>, %arg3: memref<512x128xbf16, #tpu.memory_space<vmem>>, %arg4: memref<16x128xbf16, #tpu.memory_space<vmem>>, %arg5: memref<8x128xf32, #tpu.memory_space<vmem>>, %arg6: memref<8x128xf32, #tpu.memory_space<vmem>>) attributes {dimension_semantics = [#tpu.dimension_semantics<parallel>, #tpu.dimension_semantics<parallel>], iteration_bounds = array<i64: 1, 1>, scalar_prefetch = 0 : i64, scratch_operands = 0 : i64, tpu.core_type = #tpu.core_type<tc>, window_params = [{transform_indices = @transform_0, window_bounds = array<i64: 16, 512>}, {transform_indices = @transform_1, window_bounds = array<i64: 512, 128>}, {transform_indices = @transform_2, window_bounds = array<i64: 16, 128>}, {transform_indices = @transform_3, window_bounds = array<i64: 8, 128>}, {transform_indices = @transform_4, window_bounds = array<i64: 8, 128>}]} {
    %c0 = arith.constant 0 : index
    %c0_0 = arith.constant 0 : index
    %0 = vector.load %arg2[%c0, %c0_0] : memref<16x512xbf16, #tpu.memory_space<vmem>>, vector<16x512xbf16>
    %c0_1 = arith.constant 0 : index
    %c0_2 = arith.constant 0 : index
    %1 = vector.load %arg3[%c0_1, %c0_2] : memref<512x128xbf16, #tpu.memory_space<vmem>>, vector<512x128xbf16>
    %cst = arith.constant dense<0.000000e+00> : vector<16x128xf32>
    %2 = tpu.matmul %0, %1, %cst {dimension_numbers = #tpu.dot_dimension_numbers<[1], [0], [0], [1], [0, 0, 1, 1], [], []>} : vector<16x512xbf16>, vector<512x128xbf16>, vector<16x128xf32> -> vector<16x128xf32>
    %3 = arith.truncf %2 : vector<16x128xf32> to vector<16x128xbf16>
    %c0_3 = arith.constant 0 : index
    %c0_4 = arith.constant 0 : index
    %4 = vector.load %arg4[%c0_3, %c0_4] : memref<16x128xbf16, #tpu.memory_space<vmem>>, vector<16x128xbf16>
    tpu.vector_store %arg4[%c0_3, %c0_4], %3 {strides = array<i32>} : memref<16x128xbf16, #tpu.memory_space<vmem>>, vector<16x128xbf16>,
    %cst_5 = arith.constant dense<0.000000e+00> : vector<128xf32>
    %5 = vector.multi_reduction <add>, %2, %cst_5 [0] : vector<16x128xf32> to vector<128xf32>
    %6 = vector.shape_cast %5 : vector<128xf32> to vector<1x128xf32>
    %7 = arith.mulf %2, %2 : vector<16x128xf32>
    %cst_6 = arith.constant dense<0.000000e+00> : vector<128xf32>
    %8 = vector.multi_reduction <add>, %7, %cst_6 [0] : vector<16x128xf32> to vector<128xf32>
    %9 = vector.shape_cast %8 : vector<128xf32> to vector<1x128xf32>
    %10 = tpu.iota {dimensions = array<i32: 0>} : vector<8x128xi32>
    %c0_i32 = arith.constant 0 : i32
    %11 = vector.broadcast %c0_i32 : i32 to vector<8x128xi32>
    %12 = arith.cmpi eq, %10, %11 : vector<8x128xi32>
    %cst_7 = arith.constant 0.000000e+00 : f32
    %13 = vector.shape_cast %6 : vector<1x128xf32> to vector<1x128xf32>
    %14 = vector.broadcast %13 : vector<1x128xf32> to vector<8x128xf32>
    %15 = vector.broadcast %cst_7 : f32 to vector<8x128xf32>
    %16 = arith.select %12, %14, %15 : vector<8x128xi1>, vector<8x128xf32>
    %c0_i32_8 = arith.constant 0 : i32
    %17 = vector.broadcast %c0_i32_8 : i32 to vector<8x128xi32>
    %18 = arith.cmpi eq, %10, %17 : vector<8x128xi32>
    %cst_9 = arith.constant 0.000000e+00 : f32
    %19 = vector.shape_cast %9 : vector<1x128xf32> to vector<1x128xf32>
    %20 = vector.broadcast %19 : vector<1x128xf32> to vector<8x128xf32>
    %21 = vector.broadcast %cst_9 : f32 to vector<8x128xf32>
    %22 = arith.select %18, %20, %21 : vector<8x128xi1>, vector<8x128xf32>
    %c0_10 = arith.constant 0 : index
    %c0_11 = arith.constant 0 : index
    %23 = vector.load %arg5[%c0_10, %c0_11] : memref<8x128xf32, #tpu.memory_space<vmem>>, vector<8x128xf32>
    tpu.vector_store %arg5[%c0_10, %c0_11], %16 {strides = array<i32>} : memref<8x128xf32, #tpu.memory_space<vmem>>, vector<8x128xf32>,
    %c0_12 = arith.constant 0 : index
    %c0_13 = arith.constant 0 : index
    %24 = vector.load %arg6[%c0_12, %c0_13] : memref<8x128xf32, #tpu.memory_space<vmem>>, vector<8x128xf32>
    tpu.vector_store %arg6[%c0_12, %c0_13], %22 {strides = array<i32>} : memref<8x128xf32, #tpu.memory_space<vmem>>, vector<8x128xf32>,
    return
  }
  func.func @transform_0(%arg0: i32, %arg1: i32) -> (i32, i32) {
    %c0_i32 = arith.constant 0 : i32
    %c0_i32_0 = arith.constant 0 : i32
    return %arg0, %c0_i32 : i32, i32
  }
  func.func @transform_1(%arg0: i32, %arg1: i32) -> (i32, i32) {
    %c0_i32 = arith.constant 0 : i32
    %c0_i32_0 = arith.constant 0 : i32
    return %c0_i32, %arg1 : i32, i32
  }
  func.func @transform_2(%arg0: i32, %arg1: i32) -> (i32, i32) {
    %c0_i32 = arith.constant 0 : i32
    return %arg0, %arg1 : i32, i32
  }
  func.func @transform_3(%arg0: i32, %arg1: i32) -> (i32, i32) {
    %c0_i32 = arith.constant 0 : i32
    return %arg0, %arg1 : i32, i32
  }
  func.func @transform_4(%arg0: i32, %arg1: i32) -> (i32, i32) {
    %c0_i32 = arith.constant 0 : i32
    return %arg0, %arg1 : i32, i32
  }
}

module attributes {stable_mosaic.version = 11 : i64} {
  func.func @_bn_lrelu_linear_kernel(%arg0: i32, %arg1: memref<16x128xbf16, #tpu.memory_space<vmem>>, %arg2: memref<1x128xf32, #tpu.memory_space<vmem>>, %arg3: memref<1x128xf32, #tpu.memory_space<vmem>>, %arg4: memref<1x128xf32, #tpu.memory_space<vmem>>, %arg5: memref<1x128xf32, #tpu.memory_space<vmem>>, %arg6: memref<1x128xf32, #tpu.memory_space<vmem>>, %arg7: memref<16x128xf32, #tpu.memory_space<vmem>>) attributes {dimension_semantics = [#tpu.dimension_semantics<parallel>], iteration_bounds = array<i64: 1>, scalar_prefetch = 0 : i64, scratch_operands = 0 : i64, tpu.core_type = #tpu.core_type<tc>, window_params = [{transform_indices = @transform_0, window_bounds = array<i64: 16, 128>}, {pipeline_mode = #tpu.pipeline_mode<synchronous>, transform_indices = @transform_1, window_bounds = array<i64: 1, 128>}, {pipeline_mode = #tpu.pipeline_mode<synchronous>, transform_indices = @transform_2, window_bounds = array<i64: 1, 128>}, {pipeline_mode = #tpu.pipeline_mode<synchronous>, transform_indices = @transform_3, window_bounds = array<i64: 1, 128>}, {pipeline_mode = #tpu.pipeline_mode<synchronous>, transform_indices = @transform_4, window_bounds = array<i64: 1, 128>}, {pipeline_mode = #tpu.pipeline_mode<synchronous>, transform_indices = @transform_5, window_bounds = array<i64: 1, 128>}, {transform_indices = @transform_6, window_bounds = array<i64: 16, 128>}]} {
    %c0 = arith.constant 0 : index
    %c0_0 = arith.constant 0 : index
    %0 = vector.load %arg1[%c0, %c0_0] : memref<16x128xbf16, #tpu.memory_space<vmem>>, vector<16x128xbf16>
    %1 = arith.extf %0 : vector<16x128xbf16> to vector<16x128xf32>
    %c0_1 = arith.constant 0 : index
    %c0_2 = arith.constant 0 : index
    %2 = vector.load %arg2[%c0_1, %c0_2] : memref<1x128xf32, #tpu.memory_space<vmem>>, vector<1x128xf32>
    %cst = arith.constant 5.000000e-01 : f32
    %3 = vector.broadcast %cst : f32 to vector<1x128xf32>
    %4 = arith.mulf %2, %3 : vector<1x128xf32>
    %c0_3 = arith.constant 0 : index
    %c0_4 = arith.constant 0 : index
    %5 = vector.load %arg3[%c0_3, %c0_4] : memref<1x128xf32, #tpu.memory_space<vmem>>, vector<1x128xf32>
    %cst_5 = arith.constant 5.000000e-01 : f32
    %6 = vector.broadcast %cst_5 : f32 to vector<1x128xf32>
    %7 = arith.mulf %5, %6 : vector<1x128xf32>
    %8 = arith.mulf %4, %4 : vector<1x128xf32>
    %9 = arith.subf %7, %8 : vector<1x128xf32>
    %cst_6 = arith.constant 0.000000e+00 : f32
    %10 = vector.broadcast %cst_6 : f32 to vector<1x128xf32>
    %11 = arith.maximumf %9, %10 : vector<1x128xf32>
    %cst_7 = arith.constant 9.99999974E-6 : f32
    %12 = vector.broadcast %cst_7 : f32 to vector<1x128xf32>
    %13 = arith.addf %11, %12 : vector<1x128xf32>
    %14 = math.rsqrt %13 : vector<1x128xf32>
    %15 = vector.broadcast %4 : vector<1x128xf32> to vector<16x128xf32>
    %16 = arith.subf %1, %15 : vector<16x128xf32>
    %c0_8 = arith.constant 0 : index
    %c0_9 = arith.constant 0 : index
    %17 = vector.load %arg4[%c0_8, %c0_9] : memref<1x128xf32, #tpu.memory_space<vmem>>, vector<1x128xf32>
    %18 = arith.mulf %14, %17 : vector<1x128xf32>
    %19 = vector.broadcast %18 : vector<1x128xf32> to vector<16x128xf32>
    %20 = arith.mulf %16, %19 : vector<16x128xf32>
    %c0_10 = arith.constant 0 : index
    %c0_11 = arith.constant 0 : index
    %21 = vector.load %arg5[%c0_10, %c0_11] : memref<1x128xf32, #tpu.memory_space<vmem>>, vector<1x128xf32>
    %22 = vector.broadcast %21 : vector<1x128xf32> to vector<16x128xf32>
    %23 = arith.addf %20, %22 : vector<16x128xf32>
    %cst_12 = arith.constant 0.000000e+00 : f32
    %24 = vector.broadcast %cst_12 : f32 to vector<16x128xf32>
    %25 = arith.cmpf ogt, %23, %24 : vector<16x128xf32>
    %cst_13 = arith.constant 2.000000e-01 : f32
    %26 = vector.broadcast %cst_13 : f32 to vector<16x128xf32>
    %27 = arith.mulf %26, %23 : vector<16x128xf32>
    %28 = arith.select %25, %23, %27 : vector<16x128xi1>, vector<16x128xf32>
    %c0_14 = arith.constant 0 : index
    %c0_15 = arith.constant 0 : index
    %29 = vector.load %arg6[%c0_14, %c0_15] : memref<1x128xf32, #tpu.memory_space<vmem>>, vector<1x128xf32>
    %30 = vector.broadcast %29 : vector<1x128xf32> to vector<16x128xf32>
    %31 = arith.mulf %28, %30 : vector<16x128xf32>
    %cst_16 = arith.constant dense<0.000000e+00> : vector<16xf32>
    %32 = vector.multi_reduction <add>, %31, %cst_16 [1] : vector<16x128xf32> to vector<16xf32>
    %33 = vector.shape_cast %32 : vector<16xf32> to vector<16x1xf32>
    %34 = vector.shape_cast %33 : vector<16x1xf32> to vector<16x1xf32>
    %35 = vector.broadcast %34 : vector<16x1xf32> to vector<16x128xf32>
    %c0_17 = arith.constant 0 : index
    %c0_18 = arith.constant 0 : index
    %36 = vector.load %arg7[%c0_17, %c0_18] : memref<16x128xf32, #tpu.memory_space<vmem>>, vector<16x128xf32>
    tpu.vector_store %arg7[%c0_17, %c0_18], %35 {strides = array<i32>} : memref<16x128xf32, #tpu.memory_space<vmem>>, vector<16x128xf32>,
    return
  }
  func.func @transform_0(%arg0: i32) -> (i32, i32) {
    %c0_i32 = arith.constant 0 : i32
    %c0_i32_0 = arith.constant 0 : i32
    return %arg0, %c0_i32 : i32, i32
  }
  func.func @transform_1(%arg0: i32) -> (i32, i32) {
    %c0_i32 = arith.constant 0 : i32
    %c0_i32_0 = arith.constant 0 : i32
    %c0_i32_1 = arith.constant 0 : i32
    return %c0_i32, %c0_i32_0 : i32, i32
  }
  func.func @transform_2(%arg0: i32) -> (i32, i32) {
    %c0_i32 = arith.constant 0 : i32
    %c0_i32_0 = arith.constant 0 : i32
    %c0_i32_1 = arith.constant 0 : i32
    return %c0_i32, %c0_i32_0 : i32, i32
  }
  func.func @transform_3(%arg0: i32) -> (i32, i32) {
    %c0_i32 = arith.constant 0 : i32
    %c0_i32_0 = arith.constant 0 : i32
    %c0_i32_1 = arith.constant 0 : i32
    return %c0_i32, %c0_i32_0 : i32, i32
  }
  func.func @transform_4(%arg0: i32) -> (i32, i32) {
    %c0_i32 = arith.constant 0 : i32
    %c0_i32_0 = arith.constant 0 : i32
    %c0_i32_1 = arith.constant 0 : i32
    return %c0_i32, %c0_i32_0 : i32, i32
  }
  func.func @transform_5(%arg0: i32) -> (i32, i32) {
    %c0_i32 = arith.constant 0 : i32
    %c0_i32_0 = arith.constant 0 : i32
    %c0_i32_1 = arith.constant 0 : i32
    return %c0_i32, %c0_i32_0 : i32, i32
  }
  func.func @transform_6(%arg0: i32) -> (i32, i32) {
    %c0_i32 = arith.constant 0 : i32
    %c0_i32_0 = arith.constant 0 : i32
    return %arg0, %c0_i32 : i32, i32
  }
}

</mosaic_0001>

<llo_original>
// kernel: discriminator_forward.7
$region0: #{discriminator_forward.7}
  #allocation0 [shape = 'u32[]', space=smem, size = 0x4, offset = 0x4, fixed_abs, tag = 'smem constant byte address 0x4 - core index']
  #allocation1 [shape = 'u32[72,128]{1,0:T(1,128)}', space=vmem, size = 0x9000, scoped, tag = 'internal scratch']
  %s0 = inlined_call_operand.vmem [shape: bf16[128,128], index: 0, kind: input, shape index: {}]
  %s1 = inlined_call_operand.vmem [shape: bf16[128,128], index: 1, kind: input, shape index: {}]
  %s2 = inlined_call_operand.vmem [shape: bf16[128,128], index: 2, kind: output, shape index: {}]
  %s3 = sld [smem:[#allocation0]]
  $region18: #{discriminator_forward.7} parent=0
    _
  %s5 = ssub.s32 1, %s3
  %s6 = scalar_select 0, %s5, %s3
  // Predicated region
  $region2: #{discriminator_forward.7} parent=0 // pred_check
    _
  $region3: #{discriminator_forward.7} parent=0 // pred_check_branch
    %8 = sbr.rel (0) target = $region5
  $region4: #{discriminator_forward.7} parent=0 // pred_region
    _
  $region5: #{discriminator_forward.7} parent=0 // pred_fallthru
    _
  // Predicated region
  $region6: #{discriminator_forward.7} parent=0 // pred_check
    _
  $region7: #{discriminator_forward.7} parent=0 // pred_check_branch
    %10 = sbr.rel (0) target = $region9
  $region8: #{discriminator_forward.7} parent=0 // pred_region
    _
  $region9: #{discriminator_forward.7} parent=0 // pred_fallthru
    _
  %v11 = vld [vmem:[%s0] sm:$0xf]
  %v12 = vld [vmem:[%s0 + $0x4] sm:$0xf]
  %v13 = vld [vmem:[%s0 + $0x8] sm:$0xf]
  %v14 = vld [vmem:[%s0 + $0xc] sm:$0xf]
  %v15 = vld [vmem:[%s0 + $0x10] sm:$0xf]
  %v16 = vld [vmem:[%s0 + $0x14] sm:$0xf]
  %v17 = vld [vmem:[%s0 + $0x18] sm:$0xf]
  %v18 = vld [vmem:[%s0 + $0x1c] sm:$0xf]
  %v19 = vld [vmem:[%s0 + $0x20] sm:$0xf]
  %v20 = vld [vmem:[%s0 + $0x24] sm:$0xf]
  %v21 = vld [vmem:[%s0 + $0x28] sm:$0xf]
  %v22 = vld [vmem:[%s0 + $0x2c] sm:$0xf]
  %v23 = vld [vmem:[%s0 + $0x30] sm:$0xf]
  %v24 = vld [vmem:[%s0 + $0x34] sm:$0xf]
  %v25 = vld [vmem:[%s0 + $0x38] sm:$0xf]
  %v26 = vld [vmem:[%s0 + $0x3c] sm:$0xf]
  %v27 = vld [vmem:[%s1] sm:$0xf]
  %v28 = vld [vmem:[%s1 + $0x4] sm:$0xf]
  %v29 = vld [vmem:[%s1 + $0x8] sm:$0xf]
  %v30 = vld [vmem:[%s1 + $0xc] sm:$0xf]
  %v31 = vld [vmem:[%s1 + $0x10] sm:$0xf]
  %v32 = vld [vmem:[%s1 + $0x14] sm:$0xf]
  %v33 = vld [vmem:[%s1 + $0x18] sm:$0xf]
  %v34 = vld [vmem:[%s1 + $0x1c] sm:$0xf]
  %v35 = vld [vmem:[%s1 + $0x20] sm:$0xf]
  %v36 = vld [vmem:[%s1 + $0x24] sm:$0xf]
  %v37 = vld [vmem:[%s1 + $0x28] sm:$0xf]
  %v38 = vld [vmem:[%s1 + $0x2c] sm:$0xf]
  %v39 = vld [vmem:[%s1 + $0x30] sm:$0xf]
  %v40 = vld [vmem:[%s1 + $0x34] sm:$0xf]
  %v41 = vld [vmem:[%s1 + $0x38] sm:$0xf]
  %v42 = vld [vmem:[%s1 + $0x3c] sm:$0xf]
  %v59 = vunpack.c.l.b16 %v11
  %v60 = vunpack.c.l.b16 %v12
  %v61 = vunpack.c.l.b16 %v13
  %v62 = vunpack.c.l.b16 %v14
  %v63 = vunpack.c.l.b16 %v15
  %v64 = vunpack.c.l.b16 %v16
  %v65 = vunpack.c.l.b16 %v17
  %v66 = vunpack.c.l.b16 %v18
  %v67 = vunpack.c.l.b16 %v19
  %v68 = vunpack.c.l.b16 %v20
  %v69 = vunpack.c.l.b16 %v21
  %v70 = vunpack.c.l.b16 %v22
  %v71 = vunpack.c.l.b16 %v23
  %v72 = vunpack.c.l.b16 %v24
  %v73 = vunpack.c.l.b16 %v25
  %v74 = vunpack.c.l.b16 %v26
  %v75 = vpack.c.b16 %v60, %v59
  %v76 = vpack.c.b16 %v62, %v61
  %v77 = vpack.c.b16 %v64, %v63
  %v78 = vpack.c.b16 %v66, %v65
  %v79 = vpack.c.b16 %v68, %v67
  %v80 = vpack.c.b16 %v70, %v69
  %v81 = vpack.c.b16 %v72, %v71
  %v82 = vpack.c.b16 %v74, %v73
  %v107 = vunpack.c.l.b16 %v27
  %v108 = vunpack.c.l.b16 %v28
  %v109 = vunpack.c.l.b16 %v29
  %v110 = vunpack.c.l.b16 %v30
  %v111 = vunpack.c.l.b16 %v31
  %v112 = vunpack.c.l.b16 %v32
  %v113 = vunpack.c.l.b16 %v33
  %v114 = vunpack.c.l.b16 %v34
  %v115 = vunpack.c.l.b16 %v35
  %v116 = vunpack.c.l.b16 %v36
  %v117 = vunpack.c.l.b16 %v37
  %v118 = vunpack.c.l.b16 %v38
  %v119 = vunpack.c.l.b16 %v39
  %v120 = vunpack.c.l.b16 %v40
  %v121 = vunpack.c.l.b16 %v41
  %v122 = vunpack.c.l.b16 %v42
  %v123 = vpack.c.b16 %v108, %v107
  %v124 = vpack.c.b16 %v110, %v109
  %v125 = vpack.c.b16 %v112, %v111
  %v126 = vpack.c.b16 %v114, %v113
  %v127 = vpack.c.b16 %v116, %v115
  %v128 = vpack.c.b16 %v118, %v117
  %v129 = vpack.c.b16 %v120, %v119
  %v130 = vpack.c.b16 %v122, %v121
  %139 = vmatpush.bf16.msra.mxu0 %v130
  %140 = vmatpush.bf16.msra.mxu0 %v129
  %141 = vmatpush.bf16.msra.mxu0 %v128
  %142 = vmatpush.bf16.msra.mxu0 %v127
  %143 = vmatpush.bf16.msra.mxu0 %v126
  %144 = vmatpush.bf16.msra.mxu0 %v125
  %145 = vmatpush.bf16.msra.mxu0 %v124
  %146 = vmatpush.bf16.msra.mxu0 %v123
  %147 = vmatmul.bf16.gmra.mxu0 %v75
  %v148 = vpop.f32.mrf.mxu0
  %v149 = vadd.f32 0.0, %v148
  %v150 = vpop.f32.mrf.mxu0
  %v151 = vadd.f32 0.0, %v150
  %152 = vmatmul.bf16.gmra.mxu0 %v76
  %v153 = vpop.f32.mrf.mxu0
  %v154 = vadd.f32 0.0, %v153
  %v155 = vpop.f32.mrf.mxu0
  %v156 = vadd.f32 0.0, %v155
  %157 = vmatmul.bf16.gmra.mxu0 %v77
  %v158 = vpop.f32.mrf.mxu0
  %v159 = vadd.f32 0.0, %v158
  %v160 = vpop.f32.mrf.mxu0
  %v161 = vadd.f32 0.0, %v160
  %162 = vmatmul.bf16.gmra.mxu0 %v78
  %v163 = vpop.f32.mrf.mxu0
  %v164 = vadd.f32 0.0, %v163
  %v165 = vpop.f32.mrf.mxu0
  %v166 = vadd.f32 0.0, %v165
  %167 = vmatmul.bf16.gmra.mxu0 %v79
  %v168 = vpop.f32.mrf.mxu0
  %v169 = vadd.f32 0.0, %v168
  %v170 = vpop.f32.mrf.mxu0
  %v171 = vadd.f32 0.0, %v170
  %172 = vmatmul.bf16.gmra.mxu0 %v80
  %v173 = vpop.f32.mrf.mxu0
  %v174 = vadd.f32 0.0, %v173
  %v175 = vpop.f32.mrf.mxu0
  %v176 = vadd.f32 0.0, %v175
  %177 = vmatmul.bf16.gmra.mxu0 %v81
  %v178 = vpop.f32.mrf.mxu0
  %v179 = vadd.f32 0.0, %v178
  %v180 = vpop.f32.mrf.mxu0
  %v181 = vadd.f32 0.0, %v180
  %182 = vmatmul.bf16.gmra.mxu0 %v82
  %v183 = vpop.f32.mrf.mxu0
  %v184 = vadd.f32 0.0, %v183
  %v185 = vpop.f32.mrf.mxu0
  %v186 = vadd.f32 0.0, %v185
  %187 = vdwg.mxu0
  %vm188 = vcmp.gt.f32.partialorder %v149, 0.0
  %vm189 = vcmp.gt.f32.partialorder %v151, 0.0
  %vm190 = vcmp.gt.f32.partialorder %v154, 0.0
  %vm191 = vcmp.gt.f32.partialorder %v156, 0.0
  %vm192 = vcmp.gt.f32.partialorder %v159, 0.0
  %vm193 = vcmp.gt.f32.partialorder %v161, 0.0
  %vm194 = vcmp.gt.f32.partialorder %v164, 0.0
  %vm195 = vcmp.gt.f32.partialorder %v166, 0.0
  %vm196 = vcmp.gt.f32.partialorder %v169, 0.0
  %vm197 = vcmp.gt.f32.partialorder %v171, 0.0
  %vm198 = vcmp.gt.f32.partialorder %v174, 0.0
  %vm199 = vcmp.gt.f32.partialorder %v176, 0.0
  %vm200 = vcmp.gt.f32.partialorder %v179, 0.0
  %vm201 = vcmp.gt.f32.partialorder %v181, 0.0
  %vm202 = vcmp.gt.f32.partialorder %v184, 0.0
  %vm203 = vcmp.gt.f32.partialorder %v186, 0.0
  %v204 = vmul.f32 %v149, 0.2
  %v205 = vmul.f32 %v151, 0.2
  %v206 = vmul.f32 %v154, 0.2
  %v207 = vmul.f32 %v156, 0.2
  %v208 = vmul.f32 %v159, 0.2
  %v209 = vmul.f32 %v161, 0.2
  %v210 = vmul.f32 %v164, 0.2
  %v211 = vmul.f32 %v166, 0.2
  %v212 = vmul.f32 %v169, 0.2
  %v213 = vmul.f32 %v171, 0.2
  %v214 = vmul.f32 %v174, 0.2
  %v215 = vmul.f32 %v176, 0.2
  %v216 = vmul.f32 %v179, 0.2
  %v217 = vmul.f32 %v181, 0.2
  %v218 = vmul.f32 %v184, 0.2
  %v219 = vmul.f32 %v186, 0.2
  %v220 = vsel %vm188, %v149, %v204
  %v221 = vsel %vm189, %v151, %v205
  %v222 = vsel %vm190, %v154, %v206
  %v223 = vsel %vm191, %v156, %v207
  %v224 = vsel %vm192, %v159, %v208
  %v225 = vsel %vm193, %v161, %v209
  %v226 = vsel %vm194, %v164, %v210
  %v227 = vsel %vm195, %v166, %v211
  %v228 = vsel %vm196, %v169, %v212
  %v229 = vsel %vm197, %v171, %v213
  %v230 = vsel %vm198, %v174, %v214
  %v231 = vsel %vm199, %v176, %v215
  %v232 = vsel %vm200, %v179, %v216
  %v233 = vsel %vm201, %v181, %v217
  %v234 = vsel %vm202, %v184, %v218
  %v235 = vsel %vm203, %v186, %v219
  %v236 = vpack.c.bf16 %v220, %v220
  %v237 = vpack.c.bf16 %v221, %v221
  %v238 = vpack.c.bf16 %v222, %v222
  %v239 = vpack.c.bf16 %v223, %v223
  %v240 = vpack.c.bf16 %v224, %v224
  %v241 = vpack.c.bf16 %v225, %v225
  %v242 = vpack.c.bf16 %v226, %v226
  %v243 = vpack.c.bf16 %v227, %v227
  %v244 = vpack.c.bf16 %v228, %v228
  %v245 = vpack.c.bf16 %v229, %v229
  %v246 = vpack.c.bf16 %v230, %v230
  %v247 = vpack.c.bf16 %v231, %v231
  %v248 = vpack.c.bf16 %v232, %v232
  %v249 = vpack.c.bf16 %v233, %v233
  %v250 = vpack.c.bf16 %v234, %v234
  %v251 = vpack.c.bf16 %v235, %v235
  %252 = vst [vmem:[%s2] sm:$0xf] %v236
  %253 = vst [vmem:[%s2 + $0x4] sm:$0xf] %v237
  %254 = vst [vmem:[%s2 + $0x8] sm:$0xf] %v238
  %255 = vst [vmem:[%s2 + $0xc] sm:$0xf] %v239
  %256 = vst [vmem:[%s2 + $0x10] sm:$0xf] %v240
  %257 = vst [vmem:[%s2 + $0x14] sm:$0xf] %v241
  %258 = vst [vmem:[%s2 + $0x18] sm:$0xf] %v242
  %259 = vst [vmem:[%s2 + $0x1c] sm:$0xf] %v243
  %260 = vst [vmem:[%s2 + $0x20] sm:$0xf] %v244
  %261 = vst [vmem:[%s2 + $0x24] sm:$0xf] %v245
  %262 = vst [vmem:[%s2 + $0x28] sm:$0xf] %v246
  %263 = vst [vmem:[%s2 + $0x2c] sm:$0xf] %v247
  %264 = vst [vmem:[%s2 + $0x30] sm:$0xf] %v248
  %265 = vst [vmem:[%s2 + $0x34] sm:$0xf] %v249
  %266 = vst [vmem:[%s2 + $0x38] sm:$0xf] %v250
  %267 = vst [vmem:[%s2 + $0x3c] sm:$0xf] %v251
  // Predicated region
  $region10: #{discriminator_forward.7} parent=0 // pred_check
    _
  $region11: #{discriminator_forward.7} parent=0 // pred_check_branch
    %269 = sbr.rel (0) target = $region13
  $region12: #{discriminator_forward.7} parent=0 // pred_region
    _
  $region13: #{discriminator_forward.7} parent=0 // pred_fallthru
    _
  // Predicated region
  $region14: #{discriminator_forward.7} parent=0 // pred_check
    _
  $region15: #{discriminator_forward.7} parent=0 // pred_check_branch
    %271 = sbr.rel (0) target = $region17
  $region16: #{discriminator_forward.7} parent=0 // pred_region
    _
  $region17: #{discriminator_forward.7} parent=0 // pred_fallthru
    _

// kernel: discriminator_forward.8
$region0: #{discriminator_forward.8}
  #allocation0 [shape = 'u32[]', space=smem, size = 0x4, offset = 0x4, fixed_abs, tag = 'smem constant byte address 0x4 - core index']
  #allocation1 [shape = 'u32[72,128]{1,0:T(1,128)}', space=vmem, size = 0x9000, scoped, tag = 'internal scratch']
  %s0 = inlined_call_operand.vmem [shape: bf16[32,128], index: 0, kind: input, shape index: {}]
  %s1 = inlined_call_operand.vmem [shape: bf16[128,128], index: 1, kind: input, shape index: {}]
  %s2 = inlined_call_operand.vmem [shape: bf16[32,128], index: 2, kind: output, shape index: {0}]
  %s3 = inlined_call_operand.vmem [shape: f32[8,128], index: 3, kind: output, shape index: {1}]
  %s4 = inlined_call_operand.vmem [shape: f32[8,128], index: 4, kind: output, shape index: {2}]
  %5 = xla_tuple %s2, %s3, %s4
  %s6 = sld [smem:[#allocation0]]
  $region34: #{discriminator_forward.8} parent=0
    _
  %s8 = ssub.s32 1, %s6
  %s9 = scalar_select 0, %s8, %s6
  // Predicated region
  $region2: #{discriminator_forward.8} parent=0 // pred_check
    _
  $region3: #{discriminator_forward.8} parent=0 // pred_check_branch
    %11 = sbr.rel (0) target = $region5
  $region4: #{discriminator_forward.8} parent=0 // pred_region
    _
  $region5: #{discriminator_forward.8} parent=0 // pred_fallthru
    _
  // Predicated region
  $region6: #{discriminator_forward.8} parent=0 // pred_check
    _
  $region7: #{discriminator_forward.8} parent=0 // pred_check_branch
    %13 = sbr.rel (0) target = $region9
  $region8: #{discriminator_forward.8} parent=0 // pred_region
    _
  $region9: #{discriminator_forward.8} parent=0 // pred_fallthru
    _
  %v14 = vld [vmem:[%s0] sm:$0xf]
  %v15 = vld [vmem:[%s0 + $0x4] sm:$0xf]
  %v16 = vld [vmem:[%s0 + $0x8] sm:$0xf]
  %v17 = vld [vmem:[%s0 + $0xc] sm:$0xf]
  %v18 = vld [vmem:[%s1] sm:$0xf]
  %v19 = vld [vmem:[%s1 + $0x4] sm:$0xf]
  %v20 = vld [vmem:[%s1 + $0x8] sm:$0xf]
  %v21 = vld [vmem:[%s1 + $0xc] sm:$0xf]
  %v22 = vld [vmem:[%s1 + $0x10] sm:$0xf]
  %v23 = vld [vmem:[%s1 + $0x14] sm:$0xf]
  %v24 = vld [vmem:[%s1 + $0x18] sm:$0xf]
  %v25 = vld [vmem:[%s1 + $0x1c] sm:$0xf]
  %v26 = vld [vmem:[%s1 + $0x20] sm:$0xf]
  %v27 = vld [vmem:[%s1 + $0x24] sm:$0xf]
  %v28 = vld [vmem:[%s1 + $0x28] sm:$0xf]
  %v29 = vld [vmem:[%s1 + $0x2c] sm:$0xf]
  %v30 = vld [vmem:[%s1 + $0x30] sm:$0xf]
  %v31 = vld [vmem:[%s1 + $0x34] sm:$0xf]
  %v32 = vld [vmem:[%s1 + $0x38] sm:$0xf]
  %v33 = vld [vmem:[%s1 + $0x3c] sm:$0xf]
  %v38 = vunpack.c.l.b16 %v14
  %v39 = vunpack.c.l.b16 %v15
  %v40 = vunpack.c.l.b16 %v16
  %v41 = vunpack.c.l.b16 %v17
  %v42 = vpack.c.b16 %v39, %v38
  %v43 = vpack.c.b16 %v41, %v40
  %v62 = vunpack.c.l.b16 %v18
  %v63 = vunpack.c.l.b16 %v19
  %v64 = vunpack.c.l.b16 %v20
  %v65 = vunpack.c.l.b16 %v21
  %v66 = vunpack.c.l.b16 %v22
  %v67 = vunpack.c.l.b16 %v23
  %v68 = vunpack.c.l.b16 %v24
  %v69 = vunpack.c.l.b16 %v25
  %v70 = vunpack.c.l.b16 %v26
  %v71 = vunpack.c.l.b16 %v27
  %v72 = vunpack.c.l.b16 %v28
  %v73 = vunpack.c.l.b16 %v29
  %v74 = vunpack.c.l.b16 %v30
  %v75 = vunpack.c.l.b16 %v31
  %v76 = vunpack.c.l.b16 %v32
  %v77 = vunpack.c.l.b16 %v33
  %v78 = vpack.c.b16 %v63, %v62
  %v79 = vpack.c.b16 %v65, %v64
  %v80 = vpack.c.b16 %v67, %v66
  %v81 = vpack.c.b16 %v69, %v68
  %v82 = vpack.c.b16 %v71, %v70
  %v83 = vpack.c.b16 %v73, %v72
  %v84 = vpack.c.b16 %v75, %v74
  %v85 = vpack.c.b16 %v77, %v76
  %94 = vmatpush.bf16.msra.mxu0 %v85
  %95 = vmatpush.bf16.msra.mxu0 %v84
  %96 = vmatpush.bf16.msra.mxu0 %v83
  %97 = vmatpush.bf16.msra.mxu0 %v82
  %98 = vmatpush.bf16.msra.mxu0 %v81
  %99 = vmatpush.bf16.msra.mxu0 %v80
  %100 = vmatpush.bf16.msra.mxu0 %v79
  %101 = vmatpush.bf16.msra.mxu0 %v78
  %102 = vmatmul.bf16.gmra.mxu0 %v42
  %v103 = vpop.f32.mrf.mxu0
  %v104 = vadd.f32 0.0, %v103
  %v105 = vpop.f32.mrf.mxu0
  %v106 = vadd.f32 0.0, %v105
  %107 = vmatmul.bf16.gmra.mxu0 %v43
  %v108 = vpop.f32.mrf.mxu0
  %v109 = vadd.f32 0.0, %v108
  %v110 = vpop.f32.mrf.mxu0
  %v111 = vadd.f32 0.0, %v110
  %112 = vdwg.mxu0
  %v113 = vpack.c.bf16 %v104, %v104
  %v114 = vpack.c.bf16 %v106, %v106
  %v115 = vpack.c.bf16 %v109, %v109
  %v116 = vpack.c.bf16 %v111, %v111
  %117 = vst [vmem:[%s2] sm:$0xf] %v113
  %118 = vst [vmem:[%s2 + $0x4] sm:$0xf] %v114
  %119 = vst [vmem:[%s2 + $0x8] sm:$0xf] %v115
  %120 = vst [vmem:[%s2 + $0xc] sm:$0xf] %v116
  %v121 = vadd.f32 %v104, %v106
  %v122 = vadd.f32 %v121, %v109
  %v123 = vadd.f32 %v122, %v111
  %v124 = vrot.slane %v123, 4
  %v125 = vadd.f32 %v123, %v124
  %v126 = vrot.slane %v125, 2
  %v127 = vadd.f32 %v125, %v126
  %v128 = vrot.slane %v127, 1
  %v129 = vadd.f32 %v127, %v128
  %v130 = vmul.f32 %v104, %v104
  %v131 = vmul.f32 %v106, %v106
  %v132 = vmul.f32 %v109, %v109
  %v133 = vmul.f32 %v111, %v111
  %v134 = vadd.f32 %v130, %v131
  %v135 = vadd.f32 %v134, %v132
  %v136 = vadd.f32 %v135, %v133
  %v137 = vrot.slane %v136, 4
  %v138 = vadd.f32 %v136, %v137
  %v139 = vrot.slane %v138, 2
  %v140 = vadd.f32 %v138, %v139
  %v141 = vrot.slane %v140, 1
  %v142 = vadd.f32 %v140, %v141
  %v143 = vlaneseq
  %v144 = vshrl.u32 %v143, 7
  %vm145 = vcmp.eq.s32.totalorder %v144, 0
  %v146 = vsel %vm145, %v129, 0.0
  %v147 = vsel %vm145, %v142, 0.0
  %148 = vst [vmem:[%s3] sm:$0xff] %v146
  %149 = vst [vmem:[%s4] sm:$0xff] %v147
  // Predicated region
  $region10: #{discriminator_forward.8} parent=0 // pred_check
    _
  $region11: #{discriminator_forward.8} parent=0 // pred_check_branch
    %151 = sbr.rel (0) target = $region13
  $region12: #{discriminator_forward.8} parent=0 // pred_region
    _
  $region13: #{discriminator_forward.8} parent=0 // pred_fallthru
    _
  // Predicated region
  $region14: #{discriminator_forward.8} parent=0 // pred_check
    _
  $region15: #{discriminator_forward.8} parent=0 // pred_check_branch
    %153 = sbr.rel (0) target = $region17
  $region16: #{discriminator_forward.8} parent=0 // pred_region
    _
  $region17: #{discriminator_forward.8} parent=0 // pred_fallthru
    _
  // Predicated region
  $region18: #{discriminator_forward.8} parent=0 // pred_check
    _
  $region19: #{discriminator_forward.8} parent=0 // pred_check_branch
    %155 = sbr.rel (0) target = $region21
  $region20: #{discriminator_forward.8} parent=0 // pred_region
    _
  $region21: #{discriminator_forward.8} parent=0 // pred_fallthru
    _
  // Predicated region
  $region22: #{discriminator_forward.8} parent=0 // pred_check
    _
  $region23: #{discriminator_forward.8} parent=0 // pred_check_branch
    %157 = sbr.rel (0) target = $region25
  $region24: #{discriminator_forward.8} parent=0 // pred_region
    _
  $region25: #{discriminator_forward.8} parent=0 // pred_fallthru
    _
  // Predicated region
  $region26: #{discriminator_forward.8} parent=0 // pred_check
    _
  $region27: #{discriminator_forward.8} parent=0 // pred_check_branch
    %159 = sbr.rel (0) target = $region29
  $region28: #{discriminator_forward.8} parent=0 // pred_region
    _
  $region29: #{discriminator_forward.8} parent=0 // pred_fallthru
    _
  // Predicated region
  $region30: #{discriminator_forward.8} parent=0 // pred_check
    _
  $region31: #{discriminator_forward.8} parent=0 // pred_check_branch
    %161 = sbr.rel (0) target = $region33
  $region32: #{discriminator_forward.8} parent=0 // pred_region
    _
  $region33: #{discriminator_forward.8} parent=0 // pred_fallthru
    _

// kernel: discriminator_forward.9
$region0: #{discriminator_forward.9}
  #allocation0 [shape = 'u32[]', space=smem, size = 0x4, offset = 0x4, fixed_abs, tag = 'smem constant byte address 0x4 - core index']
  #allocation1 [shape = 'u32[72,128]{1,0:T(1,128)}', space=vmem, size = 0x9000, scoped, tag = 'internal scratch']
  %s0 = inlined_call_operand.vmem [shape: bf16[32,128], index: 0, kind: input, shape index: {}]
  %s1 = inlined_call_operand.vmem [shape: f32[1,128], index: 1, kind: input, shape index: {}]
  %s2 = inlined_call_operand.vmem [shape: f32[1,128], index: 2, kind: input, shape index: {}]
  %s3 = inlined_call_operand.vmem [shape: f32[1,128], index: 3, kind: input, shape index: {}]
  %s4 = inlined_call_operand.vmem [shape: f32[1,128], index: 4, kind: input, shape index: {}]
  %s5 = inlined_call_operand.vmem [shape: bf16[32,128], index: 5, kind: output, shape index: {}]
  %s6 = sld [smem:[#allocation0]]
  $region30: #{discriminator_forward.9} parent=0
    _
  %s8 = ssub.s32 1, %s6
  %s9 = scalar_select 0, %s8, %s6
  // Predicated region
  $region2: #{discriminator_forward.9} parent=0 // pred_check
    _
  $region3: #{discriminator_forward.9} parent=0 // pred_check_branch
    %11 = sbr.rel (0) target = $region5
  $region4: #{discriminator_forward.9} parent=0 // pred_region
    _
  $region5: #{discriminator_forward.9} parent=0 // pred_fallthru
    _
  // Predicated region
  $region6: #{discriminator_forward.9} parent=0 // pred_check
    _
  $region7: #{discriminator_forward.9} parent=0 // pred_check_branch
    %13 = sbr.rel (0) target = $region9
  $region8: #{discriminator_forward.9} parent=0 // pred_region
    _
  $region9: #{discriminator_forward.9} parent=0 // pred_fallthru
    _
  // Predicated region
  $region10: #{discriminator_forward.9} parent=0 // pred_check
    _
  $region11: #{discriminator_forward.9} parent=0 // pred_check_branch
    %15 = sbr.rel (0) target = $region13
  $region12: #{discriminator_forward.9} parent=0 // pred_region
    _
  $region13: #{discriminator_forward.9} parent=0 // pred_fallthru
    _
  // Predicated region
  $region14: #{discriminator_forward.9} parent=0 // pred_check
    _
  $region15: #{discriminator_forward.9} parent=0 // pred_check_branch
    %17 = sbr.rel (0) target = $region17
  $region16: #{discriminator_forward.9} parent=0 // pred_region
    _
  $region17: #{discriminator_forward.9} parent=0 // pred_fallthru
    _
  // Predicated region
  $region18: #{discriminator_forward.9} parent=0 // pred_check
    _
  $region19: #{discriminator_forward.9} parent=0 // pred_check_branch
    %19 = sbr.rel (0) target = $region21
  $region20: #{discriminator_forward.9} parent=0 // pred_region
    _
  $region21: #{discriminator_forward.9} parent=0 // pred_fallthru
    _
  %v20 = vld [vmem:[%s0] sm:$0xf]
  %v21 = vld [vmem:[%s0 + $0x4] sm:$0xf]
  %v22 = vld [vmem:[%s0 + $0x8] sm:$0xf]
  %v23 = vld [vmem:[%s0 + $0xc] sm:$0xf]
  %v24 = vunpack.c.l.bf16 %v20
  %v25 = vunpack.c.l.bf16 %v21
  %v26 = vunpack.c.l.bf16 %v22
  %v27 = vunpack.c.l.bf16 %v23
  %v28 = vld [vmem:[%s1] sm:$0x1]
  %v29 = vmul.f32 %v28, 0.03125
  %v30 = vld [vmem:[%s2] sm:$0x1]
  %v31 = vmul.f32 %v30, 0.03125
  %v32 = vmul.f32 %v29, %v29
  %v33 = vsub.f32 %v31, %v32
  %v34 = vmax.f32 %v33, 0.0
  %v35 = vadd.f32 %v34, 1e-05
  %v36 = vrsqrt.pop %v35
  %v37 = vmul.f32 %v36, %v35
  %v38 = vmul.f32 %v37, %v36
  %v39 = vmul.f32 0.5, %v38
  %v40 = vsub.f32 1.5, %v39
  %v41 = vmul.f32 %v36, %v40
  %vm42 = vweird.f32 %v35
  %vm43 = vweird.f32 %v36
  %vm44 = vmor %vm42, %vm43
  %v45 = vsel %vm44, %v36, %v41
  %v47 = vperm.slane %v29, 0
  %v49 = vsub.f32 %v24, %v47
  %v50 = vsub.f32 %v25, %v47
  %v51 = vsub.f32 %v26, %v47
  %v52 = vsub.f32 %v27, %v47
  %v53 = vld [vmem:[%s3] sm:$0x1]
  %v54 = vmul.f32 %v45, %v53
  %v56 = vperm.slane %v54, 0
  %v58 = vmul.f32 %v49, %v56
  %v59 = vmul.f32 %v50, %v56
  %v60 = vmul.f32 %v51, %v56
  %v61 = vmul.f32 %v52, %v56
  %v62 = vld [vmem:[%s4] sm:$0x1]
  %v64 = vperm.slane %v62, 0
  %v66 = vadd.f32 %v58, %v64
  %v67 = vadd.f32 %v59, %v64
  %v68 = vadd.f32 %v60, %v64
  %v69 = vadd.f32 %v61, %v64
  %vm70 = vcmp.gt.f32.partialorder %v66, 0.0
  %vm71 = vcmp.gt.f32.partialorder %v67, 0.0
  %vm72 = vcmp.gt.f32.partialorder %v68, 0.0
  %vm73 = vcmp.gt.f32.partialorder %v69, 0.0
  %v74 = vmul.f32 %v66, 0.2
  %v75 = vmul.f32 %v67, 0.2
  %v76 = vmul.f32 %v68, 0.2
  %v77 = vmul.f32 %v69, 0.2
  %v78 = vsel %vm70, %v66, %v74
  %v79 = vsel %vm71, %v67, %v75
  %v80 = vsel %vm72, %v68, %v76
  %v81 = vsel %vm73, %v69, %v77
  %v82 = vpack.c.bf16 %v78, %v78
  %v83 = vpack.c.bf16 %v79, %v79
  %v84 = vpack.c.bf16 %v80, %v80
  %v85 = vpack.c.bf16 %v81, %v81
  %86 = vst [vmem:[%s5] sm:$0xf] %v82
  %87 = vst [vmem:[%s5 + $0x4] sm:$0xf] %v83
  %88 = vst [vmem:[%s5 + $0x8] sm:$0xf] %v84
  %89 = vst [vmem:[%s5 + $0xc] sm:$0xf] %v85
  // Predicated region
  $region22: #{discriminator_forward.9} parent=0 // pred_check
    _
  $region23: #{discriminator_forward.9} parent=0 // pred_check_branch
    %91 = sbr.rel (0) target = $region25
  $region24: #{discriminator_forward.9} parent=0 // pred_region
    _
  $region25: #{discriminator_forward.9} parent=0 // pred_fallthru
    _
  // Predicated region
  $region26: #{discriminator_forward.9} parent=0 // pred_check
    _
  $region27: #{discriminator_forward.9} parent=0 // pred_check_branch
    %93 = sbr.rel (0) target = $region29
  $region28: #{discriminator_forward.9} parent=0 // pred_region
    _
  $region29: #{discriminator_forward.9} parent=0 // pred_fallthru
    _

// kernel: discriminator_forward.10
$region0: #{discriminator_forward.10}
  #allocation0 [shape = 'u32[]', space=smem, size = 0x4, offset = 0x4, fixed_abs, tag = 'smem constant byte address 0x4 - core index']
  #allocation1 [shape = 'u32[72,128]{1,0:T(1,128)}', space=vmem, size = 0x9000, scoped, tag = 'internal scratch']
  %s0 = inlined_call_operand.vmem [shape: bf16[16,256], index: 0, kind: input, shape index: {}]
  %s1 = inlined_call_operand.vmem [shape: bf16[256,128], index: 1, kind: input, shape index: {}]
  %s2 = inlined_call_operand.vmem [shape: bf16[16,128], index: 2, kind: output, shape index: {0}]
  %s3 = inlined_call_operand.vmem [shape: f32[8,128], index: 3, kind: output, shape index: {1}]
  %s4 = inlined_call_operand.vmem [shape: f32[8,128], index: 4, kind: output, shape index: {2}]
  %5 = xla_tuple %s2, %s3, %s4
  %s6 = sld [smem:[#allocation0]]
  $region34: #{discriminator_forward.10} parent=0
    _
  %s8 = ssub.s32 1, %s6
  %s9 = scalar_select 0, %s8, %s6
  // Predicated region
  $region2: #{discriminator_forward.10} parent=0 // pred_check
    _
  $region3: #{discriminator_forward.10} parent=0 // pred_check_branch
    %11 = sbr.rel (0) target = $region5
  $region4: #{discriminator_forward.10} parent=0 // pred_region
    _
  $region5: #{discriminator_forward.10} parent=0 // pred_fallthru
    _
  // Predicated region
  $region6: #{discriminator_forward.10} parent=0 // pred_check
    _
  $region7: #{discriminator_forward.10} parent=0 // pred_check_branch
    %13 = sbr.rel (0) target = $region9
  $region8: #{discriminator_forward.10} parent=0 // pred_region
    _
  $region9: #{discriminator_forward.10} parent=0 // pred_fallthru
    _
  %v14 = vld [vmem:[%s0] sm:$0xff]
  %v15 = vld [vmem:[%s0 + $0x8] sm:$0xff]
  %v16 = vld [vmem:[%s1] sm:$0xf]
  %v17 = vld [vmem:[%s1 + $0x4] sm:$0xf]
  %v18 = vld [vmem:[%s1 + $0x8] sm:$0xf]
  %v19 = vld [vmem:[%s1 + $0xc] sm:$0xf]
  %v20 = vld [vmem:[%s1 + $0x10] sm:$0xf]
  %v21 = vld [vmem:[%s1 + $0x14] sm:$0xf]
  %v22 = vld [vmem:[%s1 + $0x18] sm:$0xf]
  %v23 = vld [vmem:[%s1 + $0x1c] sm:$0xf]
  %v24 = vld [vmem:[%s1 + $0x20] sm:$0xf]
  %v25 = vld [vmem:[%s1 + $0x24] sm:$0xf]
  %v26 = vld [vmem:[%s1 + $0x28] sm:$0xf]
  %v27 = vld [vmem:[%s1 + $0x2c] sm:$0xf]
  %v28 = vld [vmem:[%s1 + $0x30] sm:$0xf]
  %v29 = vld [vmem:[%s1 + $0x34] sm:$0xf]
  %v30 = vld [vmem:[%s1 + $0x38] sm:$0xf]
  %v31 = vld [vmem:[%s1 + $0x3c] sm:$0xf]
  %v32 = vld [vmem:[%s1 + $0x40] sm:$0xf]
  %v33 = vld [vmem:[%s1 + $0x44] sm:$0xf]
  %v34 = vld [vmem:[%s1 + $0x48] sm:$0xf]
  %v35 = vld [vmem:[%s1 + $0x4c] sm:$0xf]
  %v36 = vld [vmem:[%s1 + $0x50] sm:$0xf]
  %v37 = vld [vmem:[%s1 + $0x54] sm:$0xf]
  %v38 = vld [vmem:[%s1 + $0x58] sm:$0xf]
  %v39 = vld [vmem:[%s1 + $0x5c] sm:$0xf]
  %v40 = vld [vmem:[%s1 + $0x60] sm:$0xf]
  %v41 = vld [vmem:[%s1 + $0x64] sm:$0xf]
  %v42 = vld [vmem:[%s1 + $0x68] sm:$0xf]
  %v43 = vld [vmem:[%s1 + $0x6c] sm:$0xf]
  %v44 = vld [vmem:[%s1 + $0x70] sm:$0xf]
  %v45 = vld [vmem:[%s1 + $0x74] sm:$0xf]
  %v46 = vld [vmem:[%s1 + $0x78] sm:$0xf]
  %v47 = vld [vmem:[%s1 + $0x7c] sm:$0xf]
  %v50 = vunpack.c.l.b16 %v14
  %v51 = vunpack.c.h.b16 %v14
  %v52 = vunpack.c.l.b16 %v15
  %v53 = vunpack.c.h.b16 %v15
  %v54 = vpack.c.b16 %v52, %v50
  %v55 = vpack.c.b16 %v53, %v51
  %v90 = vunpack.c.l.b16 %v16
  %v91 = vunpack.c.l.b16 %v17
  %v92 = vunpack.c.l.b16 %v18
  %v93 = vunpack.c.l.b16 %v19
  %v94 = vunpack.c.l.b16 %v20
  %v95 = vunpack.c.l.b16 %v21
  %v96 = vunpack.c.l.b16 %v22
  %v97 = vunpack.c.l.b16 %v23
  %v98 = vunpack.c.l.b16 %v24
  %v99 = vunpack.c.l.b16 %v25
  %v100 = vunpack.c.l.b16 %v26
  %v101 = vunpack.c.l.b16 %v27
  %v102 = vunpack.c.l.b16 %v28
  %v103 = vunpack.c.l.b16 %v29
  %v104 = vunpack.c.l.b16 %v30
  %v105 = vunpack.c.l.b16 %v31
  %v106 = vunpack.c.l.b16 %v32
  %v107 = vunpack.c.l.b16 %v33
  %v108 = vunpack.c.l.b16 %v34
  %v109 = vunpack.c.l.b16 %v35
  %v110 = vunpack.c.l.b16 %v36
  %v111 = vunpack.c.l.b16 %v37
  %v112 = vunpack.c.l.b16 %v38
  %v113 = vunpack.c.l.b16 %v39
  %v114 = vunpack.c.l.b16 %v40
  %v115 = vunpack.c.l.b16 %v41
  %v116 = vunpack.c.l.b16 %v42
  %v117 = vunpack.c.l.b16 %v43
  %v118 = vunpack.c.l.b16 %v44
  %v119 = vunpack.c.l.b16 %v45
  %v120 = vunpack.c.l.b16 %v46
  %v121 = vunpack.c.l.b16 %v47
  %v122 = vpack.c.b16 %v91, %v90
  %v123 = vpack.c.b16 %v93, %v92
  %v124 = vpack.c.b16 %v95, %v94
  %v125 = vpack.c.b16 %v97, %v96
  %v126 = vpack.c.b16 %v99, %v98
  %v127 = vpack.c.b16 %v101, %v100
  %v128 = vpack.c.b16 %v103, %v102
  %v129 = vpack.c.b16 %v105, %v104
  %v130 = vpack.c.b16 %v107, %v106
  %v131 = vpack.c.b16 %v109, %v108
  %v132 = vpack.c.b16 %v111, %v110
  %v133 = vpack.c.b16 %v113, %v112
  %v134 = vpack.c.b16 %v115, %v114
  %v135 = vpack.c.b16 %v117, %v116
  %v136 = vpack.c.b16 %v119, %v118
  %v137 = vpack.c.b16 %v121, %v120
  %154 = vmatpush.bf16.msra.mxu0 %v129
  %155 = vmatpush.bf16.msra.mxu0 %v128
  %156 = vmatpush.bf16.msra.mxu0 %v127
  %157 = vmatpush.bf16.msra.mxu0 %v126
  %158 = vmatpush.bf16.msra.mxu0 %v125
  %159 = vmatpush.bf16.msra.mxu0 %v124
  %160 = vmatpush.bf16.msra.mxu0 %v123
  %161 = vmatpush.bf16.msra.mxu0 %v122
  %162 = vmatmul.bf16.gmra.mxu0 %v54
  %v163 = vpop.f32.mrf.mxu0
  %v164 = vadd.f32 0.0, %v163
  %v165 = vpop.f32.mrf.mxu0
  %v166 = vadd.f32 0.0, %v165
  %167 = vdwg.mxu0
  %168 = vmatpush.bf16.msra.mxu0 %v137
  %169 = vmatpush.bf16.msra.mxu0 %v136
  %170 = vmatpush.bf16.msra.mxu0 %v135
  %171 = vmatpush.bf16.msra.mxu0 %v134
  %172 = vmatpush.bf16.msra.mxu0 %v133
  %173 = vmatpush.bf16.msra.mxu0 %v132
  %174 = vmatpush.bf16.msra.mxu0 %v131
  %175 = vmatpush.bf16.msra.mxu0 %v130
  %176 = vmatmul.bf16.gmra.mxu0 %v55
  %v177 = vpop.f32.mrf.mxu0
  %v178 = vadd.f32 %v164, %v177
  %v179 = vpop.f32.mrf.mxu0
  %v180 = vadd.f32 %v166, %v179
  %181 = vdwg.mxu0
  %v182 = vpack.c.bf16 %v178, %v178
  %v183 = vpack.c.bf16 %v180, %v180
  %184 = vst [vmem:[%s2] sm:$0xf] %v182
  %185 = vst [vmem:[%s2 + $0x4] sm:$0xf] %v183
  %v186 = vadd.f32 %v178, %v180
  %v187 = vrot.slane %v186, 4
  %v188 = vadd.f32 %v186, %v187
  %v189 = vrot.slane %v188, 2
  %v190 = vadd.f32 %v188, %v189
  %v191 = vrot.slane %v190, 1
  %v192 = vadd.f32 %v190, %v191
  %v193 = vmul.f32 %v178, %v178
  %v194 = vmul.f32 %v180, %v180
  %v195 = vadd.f32 %v193, %v194
  %v196 = vrot.slane %v195, 4
  %v197 = vadd.f32 %v195, %v196
  %v198 = vrot.slane %v197, 2
  %v199 = vadd.f32 %v197, %v198
  %v200 = vrot.slane %v199, 1
  %v201 = vadd.f32 %v199, %v200
  %v202 = vlaneseq
  %v203 = vshrl.u32 %v202, 7
  %vm204 = vcmp.eq.s32.totalorder %v203, 0
  %v205 = vsel %vm204, %v192, 0.0
  %v206 = vsel %vm204, %v201, 0.0
  %207 = vst [vmem:[%s3] sm:$0xff] %v205
  %208 = vst [vmem:[%s4] sm:$0xff] %v206
  // Predicated region
  $region10: #{discriminator_forward.10} parent=0 // pred_check
    _
  $region11: #{discriminator_forward.10} parent=0 // pred_check_branch
    %210 = sbr.rel (0) target = $region13
  $region12: #{discriminator_forward.10} parent=0 // pred_region
    _
  $region13: #{discriminator_forward.10} parent=0 // pred_fallthru
    _
  // Predicated region
  $region14: #{discriminator_forward.10} parent=0 // pred_check
    _
  $region15: #{discriminator_forward.10} parent=0 // pred_check_branch
    %212 = sbr.rel (0) target = $region17
  $region16: #{discriminator_forward.10} parent=0 // pred_region
    _
  $region17: #{discriminator_forward.10} parent=0 // pred_fallthru
    _
  // Predicated region
  $region18: #{discriminator_forward.10} parent=0 // pred_check
    _
  $region19: #{discriminator_forward.10} parent=0 // pred_check_branch
    %214 = sbr.rel (0) target = $region21
  $region20: #{discriminator_forward.10} parent=0 // pred_region
    _
  $region21: #{discriminator_forward.10} parent=0 // pred_fallthru
    _
  // Predicated region
  $region22: #{discriminator_forward.10} parent=0 // pred_check
    _
  $region23: #{discriminator_forward.10} parent=0 // pred_check_branch
    %216 = sbr.rel (0) target = $region25
  $region24: #{discriminator_forward.10} parent=0 // pred_region
    _
  $region25: #{discriminator_forward.10} parent=0 // pred_fallthru
    _
  // Predicated region
  $region26: #{discriminator_forward.10} parent=0 // pred_check
    _
  $region27: #{discriminator_forward.10} parent=0 // pred_check_branch
    %218 = sbr.rel (0) target = $region29
  $region28: #{discriminator_forward.10} parent=0 // pred_region
    _
  $region29: #{discriminator_forward.10} parent=0 // pred_fallthru
    _
  // Predicated region
  $region30: #{discriminator_forward.10} parent=0 // pred_check
    _
  $region31: #{discriminator_forward.10} parent=0 // pred_check_branch
    %220 = sbr.rel (0) target = $region33
  $region32: #{discriminator_forward.10} parent=0 // pred_region
    _
  $region33: #{discriminator_forward.10} parent=0 // pred_fallthru
    _

// kernel: discriminator_forward.11
$region0: #{discriminator_forward.11}
  #allocation0 [shape = 'u32[]', space=smem, size = 0x4, offset = 0x4, fixed_abs, tag = 'smem constant byte address 0x4 - core index']
  #allocation1 [shape = 'u32[72,128]{1,0:T(1,128)}', space=vmem, size = 0x9000, scoped, tag = 'internal scratch']
  %s0 = inlined_call_operand.vmem [shape: bf16[16,128], index: 0, kind: input, shape index: {}]
  %s1 = inlined_call_operand.vmem [shape: f32[1,128], index: 1, kind: input, shape index: {}]
  %s2 = inlined_call_operand.vmem [shape: f32[1,128], index: 2, kind: input, shape index: {}]
  %s3 = inlined_call_operand.vmem [shape: f32[1,128], index: 3, kind: input, shape index: {}]
  %s4 = inlined_call_operand.vmem [shape: f32[1,128], index: 4, kind: input, shape index: {}]
  %s5 = inlined_call_operand.vmem [shape: bf16[16,128], index: 5, kind: output, shape index: {}]
  %s6 = sld [smem:[#allocation0]]
  $region30: #{discriminator_forward.11} parent=0
    _
  %s8 = ssub.s32 1, %s6
  %s9 = scalar_select 0, %s8, %s6
  // Predicated region
  $region2: #{discriminator_forward.11} parent=0 // pred_check
    _
  $region3: #{discriminator_forward.11} parent=0 // pred_check_branch
    %11 = sbr.rel (0) target = $region5
  $region4: #{discriminator_forward.11} parent=0 // pred_region
    _
  $region5: #{discriminator_forward.11} parent=0 // pred_fallthru
    _
  // Predicated region
  $region6: #{discriminator_forward.11} parent=0 // pred_check
    _
  $region7: #{discriminator_forward.11} parent=0 // pred_check_branch
    %13 = sbr.rel (0) target = $region9
  $region8: #{discriminator_forward.11} parent=0 // pred_region
    _
  $region9: #{discriminator_forward.11} parent=0 // pred_fallthru
    _
  // Predicated region
  $region10: #{discriminator_forward.11} parent=0 // pred_check
    _
  $region11: #{discriminator_forward.11} parent=0 // pred_check_branch
    %15 = sbr.rel (0) target = $region13
  $region12: #{discriminator_forward.11} parent=0 // pred_region
    _
  $region13: #{discriminator_forward.11} parent=0 // pred_fallthru
    _
  // Predicated region
  $region14: #{discriminator_forward.11} parent=0 // pred_check
    _
  $region15: #{discriminator_forward.11} parent=0 // pred_check_branch
    %17 = sbr.rel (0) target = $region17
  $region16: #{discriminator_forward.11} parent=0 // pred_region
    _
  $region17: #{discriminator_forward.11} parent=0 // pred_fallthru
    _
  // Predicated region
  $region18: #{discriminator_forward.11} parent=0 // pred_check
    _
  $region19: #{discriminator_forward.11} parent=0 // pred_check_branch
    %19 = sbr.rel (0) target = $region21
  $region20: #{discriminator_forward.11} parent=0 // pred_region
    _
  $region21: #{discriminator_forward.11} parent=0 // pred_fallthru
    _
  %v20 = vld [vmem:[%s0] sm:$0xf]
  %v21 = vld [vmem:[%s0 + $0x4] sm:$0xf]
  %v22 = vunpack.c.l.bf16 %v20
  %v23 = vunpack.c.l.bf16 %v21
  %v24 = vld [vmem:[%s1] sm:$0x1]
  %v25 = vmul.f32 %v24, 0.125
  %v26 = vld [vmem:[%s2] sm:$0x1]
  %v27 = vmul.f32 %v26, 0.125
  %v28 = vmul.f32 %v25, %v25
  %v29 = vsub.f32 %v27, %v28
  %v30 = vmax.f32 %v29, 0.0
  %v31 = vadd.f32 %v30, 1e-05
  %v32 = vrsqrt.pop %v31
  %v33 = vmul.f32 %v32, %v31
  %v34 = vmul.f32 %v33, %v32
  %v35 = vmul.f32 0.5, %v34
  %v36 = vsub.f32 1.5, %v35
  %v37 = vmul.f32 %v32, %v36
  %vm38 = vweird.f32 %v31
  %vm39 = vweird.f32 %v32
  %vm40 = vmor %vm38, %vm39
  %v41 = vsel %vm40, %v32, %v37
  %v43 = vperm.slane %v25, 0
  %v45 = vsub.f32 %v22, %v43
  %v46 = vsub.f32 %v23, %v43
  %v47 = vld [vmem:[%s3] sm:$0x1]
  %v48 = vmul.f32 %v41, %v47
  %v50 = vperm.slane %v48, 0
  %v52 = vmul.f32 %v45, %v50
  %v53 = vmul.f32 %v46, %v50
  %v54 = vld [vmem:[%s4] sm:$0x1]
  %v56 = vperm.slane %v54, 0
  %v58 = vadd.f32 %v52, %v56
  %v59 = vadd.f32 %v53, %v56
  %vm60 = vcmp.gt.f32.partialorder %v58, 0.0
  %vm61 = vcmp.gt.f32.partialorder %v59, 0.0
  %v62 = vmul.f32 %v58, 0.2
  %v63 = vmul.f32 %v59, 0.2
  %v64 = vsel %vm60, %v58, %v62
  %v65 = vsel %vm61, %v59, %v63
  %v66 = vpack.c.bf16 %v64, %v64
  %v67 = vpack.c.bf16 %v65, %v65
  %68 = vst [vmem:[%s5] sm:$0xf] %v66
  %69 = vst [vmem:[%s5 + $0x4] sm:$0xf] %v67
  // Predicated region
  $region22: #{discriminator_forward.11} parent=0 // pred_check
    _
  $region23: #{discriminator_forward.11} parent=0 // pred_check_branch
    %71 = sbr.rel (0) target = $region25
  $region24: #{discriminator_forward.11} parent=0 // pred_region
    _
  $region25: #{discriminator_forward.11} parent=0 // pred_fallthru
    _
  // Predicated region
  $region26: #{discriminator_forward.11} parent=0 // pred_check
    _
  $region27: #{discriminator_forward.11} parent=0 // pred_check_branch
    %73 = sbr.rel (0) target = $region29
  $region28: #{discriminator_forward.11} parent=0 // pred_region
    _
  $region29: #{discriminator_forward.11} parent=0 // pred_fallthru
    _

// kernel: discriminator_forward.13
$region0: #{discriminator_forward.13}
  #allocation0 [shape = 'u32[]', space=smem, size = 0x4, offset = 0x4, fixed_abs, tag = 'smem constant byte address 0x4 - core index']
  #allocation1 [shape = 'u32[72,128]{1,0:T(1,128)}', space=vmem, size = 0x9000, scoped, tag = 'internal scratch']
  %s0 = inlined_call_operand.vmem [shape: bf16[16,128], index: 0, kind: input, shape index: {}]
  %s1 = inlined_call_operand.vmem [shape: f32[1,128], index: 1, kind: input, shape index: {}]
  %s2 = inlined_call_operand.vmem [shape: f32[1,128], index: 2, kind: input, shape index: {}]
  %s3 = inlined_call_operand.vmem [shape: f32[1,128], index: 3, kind: input, shape index: {}]
  %s4 = inlined_call_operand.vmem [shape: f32[1,128], index: 4, kind: input, shape index: {}]
  %s5 = inlined_call_operand.vmem [shape: f32[1,128], index: 5, kind: input, shape index: {}]
  %s6 = inlined_call_operand.vmem [shape: f32[16,128], index: 6, kind: output, shape index: {}]
  %s7 = sld [smem:[#allocation0]]
  $region34: #{discriminator_forward.13} parent=0
    _
  %s9 = ssub.s32 1, %s7
  %s10 = scalar_select 0, %s9, %s7
  // Predicated region
  $region2: #{discriminator_forward.13} parent=0 // pred_check
    _
  $region3: #{discriminator_forward.13} parent=0 // pred_check_branch
    %12 = sbr.rel (0) target = $region5
  $region4: #{discriminator_forward.13} parent=0 // pred_region
    _
  $region5: #{discriminator_forward.13} parent=0 // pred_fallthru
    _
  // Predicated region
  $region6: #{discriminator_forward.13} parent=0 // pred_check
    _
  $region7: #{discriminator_forward.13} parent=0 // pred_check_branch
    %14 = sbr.rel (0) target = $region9
  $region8: #{discriminator_forward.13} parent=0 // pred_region
    _
  $region9: #{discriminator_forward.13} parent=0 // pred_fallthru
    _
  // Predicated region
  $region10: #{discriminator_forward.13} parent=0 // pred_check
    _
  $region11: #{discriminator_forward.13} parent=0 // pred_check_branch
    %16 = sbr.rel (0) target = $region13
  $region12: #{discriminator_forward.13} parent=0 // pred_region
    _
  $region13: #{discriminator_forward.13} parent=0 // pred_fallthru
    _
  // Predicated region
  $region14: #{discriminator_forward.13} parent=0 // pred_check
    _
  $region15: #{discriminator_forward.13} parent=0 // pred_check_branch
    %18 = sbr.rel (0) target = $region17
  $region16: #{discriminator_forward.13} parent=0 // pred_region
    _
  $region17: #{discriminator_forward.13} parent=0 // pred_fallthru
    _
  // Predicated region
  $region18: #{discriminator_forward.13} parent=0 // pred_check
    _
  $region19: #{discriminator_forward.13} parent=0 // pred_check_branch
    %20 = sbr.rel (0) target = $region21
  $region20: #{discriminator_forward.13} parent=0 // pred_region
    _
  $region21: #{discriminator_forward.13} parent=0 // pred_fallthru
    _
  // Predicated region
  $region22: #{discriminator_forward.13} parent=0 // pred_check
    _
  $region23: #{discriminator_forward.13} parent=0 // pred_check_branch
    %22 = sbr.rel (0) target = $region25
  $region24: #{discriminator_forward.13} parent=0 // pred_region
    _
  $region25: #{discriminator_forward.13} parent=0 // pred_fallthru
    _
  %v23 = vld [vmem:[%s0] sm:$0xf]
  %v24 = vld [vmem:[%s0 + $0x4] sm:$0xf]
  %v25 = vunpack.c.l.bf16 %v23
  %v26 = vunpack.c.l.bf16 %v24
  %v27 = vld [vmem:[%s1] sm:$0x1]
  %v28 = vmul.f32 %v27, 0.5
  %v29 = vld [vmem:[%s2] sm:$0x1]
  %v30 = vmul.f32 %v29, 0.5
  %v31 = vmul.f32 %v28, %v28
  %v32 = vsub.f32 %v30, %v31
  %v33 = vmax.f32 %v32, 0.0
  %v34 = vadd.f32 %v33, 1e-05
  %v35 = vrsqrt.pop %v34
  %v36 = vmul.f32 %v35, %v34
  %v37 = vmul.f32 %v36, %v35
  %v38 = vmul.f32 0.5, %v37
  %v39 = vsub.f32 1.5, %v38
  %v40 = vmul.f32 %v35, %v39
  %vm41 = vweird.f32 %v34
  %vm42 = vweird.f32 %v35
  %vm43 = vmor %vm41, %vm42
  %v44 = vsel %vm43, %v35, %v40
  %v46 = vperm.slane %v28, 0
  %v48 = vsub.f32 %v25, %v46
  %v49 = vsub.f32 %v26, %v46
  %v50 = vld [vmem:[%s3] sm:$0x1]
  %v51 = vmul.f32 %v44, %v50
  %v53 = vperm.slane %v51, 0
  %v55 = vmul.f32 %v48, %v53
  %v56 = vmul.f32 %v49, %v53
  %v57 = vld [vmem:[%s4] sm:$0x1]
  %v59 = vperm.slane %v57, 0
  %v61 = vadd.f32 %v55, %v59
  %v62 = vadd.f32 %v56, %v59
  %vm63 = vcmp.gt.f32.partialorder %v61, 0.0
  %vm64 = vcmp.gt.f32.partialorder %v62, 0.0
  %v65 = vmul.f32 %v61, 0.2
  %v66 = vmul.f32 %v62, 0.2
  %v67 = vsel %vm63, %v61, %v65
  %v68 = vsel %vm64, %v62, %v66
  %v69 = vld [vmem:[%s5] sm:$0x1]
  %v71 = vperm.slane %v69, 0
  %v73 = vmul.f32 %v67, %v71
  %v74 = vmul.f32 %v68, %v71
  %75 = vadd.xlane.f32.xlu0 %v73
  %v76 = vpop.xlane.xlu0 %75
  %77 = vadd.xlane.f32.xlu0 %v74
  %v78 = vpop.xlane.xlu0 %77
  %79 = vst [vmem:[%s6] sm:$0xff] %v76
  %80 = vst [vmem:[%s6 + $0x8] sm:$0xff] %v78
  // Predicated region
  $region26: #{discriminator_forward.13} parent=0 // pred_check
    _
  $region27: #{discriminator_forward.13} parent=0 // pred_check_branch
    %82 = sbr.rel (0) target = $region29
  $region28: #{discriminator_forward.13} parent=0 // pred_region
    _
  $region29: #{discriminator_forward.13} parent=0 // pred_fallthru
    _
  // Predicated region
  $region30: #{discriminator_forward.13} parent=0 // pred_check
    _
  $region31: #{discriminator_forward.13} parent=0 // pred_check_branch
    %84 = sbr.rel (0) target = $region33
  $region32: #{discriminator_forward.13} parent=0 // pred_region
    _
  $region33: #{discriminator_forward.13} parent=0 // pred_fallthru
    _

// kernel: discriminator_forward.12
$region0: #{discriminator_forward.12}
  #allocation0 [shape = 'u32[]', space=smem, size = 0x4, offset = 0x4, fixed_abs, tag = 'smem constant byte address 0x4 - core index']
  #allocation1 [shape = 'u32[72,128]{1,0:T(1,128)}', space=vmem, size = 0x9000, scoped, tag = 'internal scratch']
  %s0 = inlined_call_operand.vmem [shape: bf16[16,512], index: 0, kind: input, shape index: {}]
  %s1 = inlined_call_operand.vmem [shape: bf16[512,128], index: 1, kind: input, shape index: {}]
  %s2 = inlined_call_operand.vmem [shape: bf16[16,128], index: 2, kind: output, shape index: {0}]
  %s3 = inlined_call_operand.vmem [shape: f32[8,128], index: 3, kind: output, shape index: {1}]
  %s4 = inlined_call_operand.vmem [shape: f32[8,128], index: 4, kind: output, shape index: {2}]
  %5 = xla_tuple %s2, %s3, %s4
  %s6 = sld [smem:[#allocation0]]
  $region34: #{discriminator_forward.12} parent=0
    _
  %s8 = ssub.s32 1, %s6
  %s9 = scalar_select 0, %s8, %s6
  // Predicated region
  $region2: #{discriminator_forward.12} parent=0 // pred_check
    _
  $region3: #{discriminator_forward.12} parent=0 // pred_check_branch
    %11 = sbr.rel (0) target = $region5
  $region4: #{discriminator_forward.12} parent=0 // pred_region
    _
  $region5: #{discriminator_forward.12} parent=0 // pred_fallthru
    _
  // Predicated region
  $region6: #{discriminator_forward.12} parent=0 // pred_check
    _
  $region7: #{discriminator_forward.12} parent=0 // pred_check_branch
    %13 = sbr.rel (0) target = $region9
  $region8: #{discriminator_forward.12} parent=0 // pred_region
    _
  $region9: #{discriminator_forward.12} parent=0 // pred_fallthru
    _
  %v14 = vld [vmem:[%s0] sm:$0xff]
  %v15 = vld [vmem:[%s0 + $0x8] sm:$0xff]
  %v16 = vld [vmem:[%s0 + $0x10] sm:$0xff]
  %v17 = vld [vmem:[%s0 + $0x18] sm:$0xff]
  %v18 = vld [vmem:[%s1] sm:$0xf]
  %v19 = vld [vmem:[%s1 + $0x4] sm:$0xf]
  %v20 = vld [vmem:[%s1 + $0x8] sm:$0xf]
  %v21 = vld [vmem:[%s1 + $0xc] sm:$0xf]
  %v22 = vld [vmem:[%s1 + $0x10] sm:$0xf]
  %v23 = vld [vmem:[%s1 + $0x14] sm:$0xf]
  %v24 = vld [vmem:[%s1 + $0x18] sm:$0xf]
  %v25 = vld [vmem:[%s1 + $0x1c] sm:$0xf]
  %v26 = vld [vmem:[%s1 + $0x20] sm:$0xf]
  %v27 = vld [vmem:[%s1 + $0x24] sm:$0xf]
  %v28 = vld [vmem:[%s1 + $0x28] sm:$0xf]
  %v29 = vld [vmem:[%s1 + $0x2c] sm:$0xf]
  %v30 = vld [vmem:[%s1 + $0x30] sm:$0xf]
  %v31 = vld [vmem:[%s1 + $0x34] sm:$0xf]
  %v32 = vld [vmem:[%s1 + $0x38] sm:$0xf]
  %v33 = vld [vmem:[%s1 + $0x3c] sm:$0xf]
  %v34 = vld [vmem:[%s1 + $0x40] sm:$0xf]
  %v35 = vld [vmem:[%s1 + $0x44] sm:$0xf]
  %v36 = vld [vmem:[%s1 + $0x48] sm:$0xf]
  %v37 = vld [vmem:[%s1 + $0x4c] sm:$0xf]
  %v38 = vld [vmem:[%s1 + $0x50] sm:$0xf]
  %v39 = vld [vmem:[%s1 + $0x54] sm:$0xf]
  %v40 = vld [vmem:[%s1 + $0x58] sm:$0xf]
  %v41 = vld [vmem:[%s1 + $0x5c] sm:$0xf]
  %v42 = vld [vmem:[%s1 + $0x60] sm:$0xf]
  %v43 = vld [vmem:[%s1 + $0x64] sm:$0xf]
  %v44 = vld [vmem:[%s1 + $0x68] sm:$0xf]
  %v45 = vld [vmem:[%s1 + $0x6c] sm:$0xf]
  %v46 = vld [vmem:[%s1 + $0x70] sm:$0xf]
  %v47 = vld [vmem:[%s1 + $0x74] sm:$0xf]
  %v48 = vld [vmem:[%s1 + $0x78] sm:$0xf]
  %v49 = vld [vmem:[%s1 + $0x7c] sm:$0xf]
  %v50 = vld [vmem:[%s1 + $0x80] sm:$0xf]
  %v51 = vld [vmem:[%s1 + $0x84] sm:$0xf]
  %v52 = vld [vmem:[%s1 + $0x88] sm:$0xf]
  %v53 = vld [vmem:[%s1 + $0x8c] sm:$0xf]
  %v54 = vld [vmem:[%s1 + $0x90] sm:$0xf]
  %v55 = vld [vmem:[%s1 + $0x94] sm:$0xf]
  %v56 = vld [vmem:[%s1 + $0x98] sm:$0xf]
  %v57 = vld [vmem:[%s1 + $0x9c] sm:$0xf]
  %v58 = vld [vmem:[%s1 + $0xa0] sm:$0xf]
  %v59 = vld [vmem:[%s1 + $0xa4] sm:$0xf]
  %v60 = vld [vmem:[%s1 + $0xa8] sm:$0xf]
  %v61 = vld [vmem:[%s1 + $0xac] sm:$0xf]
  %v62 = vld [vmem:[%s1 + $0xb0] sm:$0xf]
  %v63 = vld [vmem:[%s1 + $0xb4] sm:$0xf]
  %v64 = vld [vmem:[%s1 + $0xb8] sm:$0xf]
  %v65 = vld [vmem:[%s1 + $0xbc] sm:$0xf]
  %v66 = vld [vmem:[%s1 + $0xc0] sm:$0xf]
  %v67 = vld [vmem:[%s1 + $0xc4] sm:$0xf]
  %v68 = vld [vmem:[%s1 + $0xc8] sm:$0xf]
  %v69 = vld [vmem:[%s1 + $0xcc] sm:$0xf]
  %v70 = vld [vmem:[%s1 + $0xd0] sm:$0xf]
  %v71 = vld [vmem:[%s1 + $0xd4] sm:$0xf]
  %v72 = vld [vmem:[%s1 + $0xd8] sm:$0xf]
  %v73 = vld [vmem:[%s1 + $0xdc] sm:$0xf]
  %v74 = vld [vmem:[%s1 + $0xe0] sm:$0xf]
  %v75 = vld [vmem:[%s1 + $0xe4] sm:$0xf]
  %v76 = vld [vmem:[%s1 + $0xe8] sm:$0xf]
  %v77 = vld [vmem:[%s1 + $0xec] sm:$0xf]
  %v78 = vld [vmem:[%s1 + $0xf0] sm:$0xf]
  %v79 = vld [vmem:[%s1 + $0xf4] sm:$0xf]
  %v80 = vld [vmem:[%s1 + $0xf8] sm:$0xf]
  %v81 = vld [vmem:[%s1 + $0xfc] sm:$0xf]
  %v86 = vunpack.c.l.b16 %v14
  %v87 = vunpack.c.h.b16 %v14
  %v88 = vunpack.c.l.b16 %v15
  %v89 = vunpack.c.h.b16 %v15
  %v90 = vunpack.c.l.b16 %v16
  %v91 = vunpack.c.h.b16 %v16
  %v92 = vunpack.c.l.b16 %v17
  %v93 = vunpack.c.h.b16 %v17
  %v94 = vpack.c.b16 %v90, %v86
  %v95 = vpack.c.b16 %v91, %v87
  %v96 = vpack.c.b16 %v92, %v88
  %v97 = vpack.c.b16 %v93, %v89
  %v166 = vunpack.c.l.b16 %v18
  %v167 = vunpack.c.l.b16 %v19
  %v168 = vunpack.c.l.b16 %v20
  %v169 = vunpack.c.l.b16 %v21
  %v170 = vunpack.c.l.b16 %v22
  %v171 = vunpack.c.l.b16 %v23
  %v172 = vunpack.c.l.b16 %v24
  %v173 = vunpack.c.l.b16 %v25
  %v174 = vunpack.c.l.b16 %v26
  %v175 = vunpack.c.l.b16 %v27
  %v176 = vunpack.c.l.b16 %v28
  %v177 = vunpack.c.l.b16 %v29
  %v178 = vunpack.c.l.b16 %v30
  %v179 = vunpack.c.l.b16 %v31
  %v180 = vunpack.c.l.b16 %v32
  %v181 = vunpack.c.l.b16 %v33
  %v182 = vunpack.c.l.b16 %v34
  %v183 = vunpack.c.l.b16 %v35
  %v184 = vunpack.c.l.b16 %v36
  %v185 = vunpack.c.l.b16 %v37
  %v186 = vunpack.c.l.b16 %v38
  %v187 = vunpack.c.l.b16 %v39
  %v188 = vunpack.c.l.b16 %v40
  %v189 = vunpack.c.l.b16 %v41
  %v190 = vunpack.c.l.b16 %v42
  %v191 = vunpack.c.l.b16 %v43
  %v192 = vunpack.c.l.b16 %v44
  %v193 = vunpack.c.l.b16 %v45
  %v194 = vunpack.c.l.b16 %v46
  %v195 = vunpack.c.l.b16 %v47
  %v196 = vunpack.c.l.b16 %v48
  %v197 = vunpack.c.l.b16 %v49
  %v198 = vunpack.c.l.b16 %v50
  %v199 = vunpack.c.l.b16 %v51
  %v200 = vunpack.c.l.b16 %v52
  %v201 = vunpack.c.l.b16 %v53
  %v202 = vunpack.c.l.b16 %v54
  %v203 = vunpack.c.l.b16 %v55
  %v204 = vunpack.c.l.b16 %v56
  %v205 = vunpack.c.l.b16 %v57
  %v206 = vunpack.c.l.b16 %v58
  %v207 = vunpack.c.l.b16 %v59
  %v208 = vunpack.c.l.b16 %v60
  %v209 = vunpack.c.l.b16 %v61
  %v210 = vunpack.c.l.b16 %v62
  %v211 = vunpack.c.l.b16 %v63
  %v212 = vunpack.c.l.b16 %v64
  %v213 = vunpack.c.l.b16 %v65
  %v214 = vunpack.c.l.b16 %v66
  %v215 = vunpack.c.l.b16 %v67
  %v216 = vunpack.c.l.b16 %v68
  %v217 = vunpack.c.l.b16 %v69
  %v218 = vunpack.c.l.b16 %v70
  %v219 = vunpack.c.l.b16 %v71
  %v220 = vunpack.c.l.b16 %v72
  %v221 = vunpack.c.l.b16 %v73
  %v222 = vunpack.c.l.b16 %v74
  %v223 = vunpack.c.l.b16 %v75
  %v224 = vunpack.c.l.b16 %v76
  %v225 = vunpack.c.l.b16 %v77
  %v226 = vunpack.c.l.b16 %v78
  %v227 = vunpack.c.l.b16 %v79
  %v228 = vunpack.c.l.b16 %v80
  %v229 = vunpack.c.l.b16 %v81
  %v230 = vpack.c.b16 %v167, %v166
  %v231 = vpack.c.b16 %v169, %v168
  %v232 = vpack.c.b16 %v171, %v170
  %v233 = vpack.c.b16 %v173, %v172
  %v234 = vpack.c.b16 %v175, %v174
  %v235 = vpack.c.b16 %v177, %v176
  %v236 = vpack.c.b16 %v179, %v178
  %v237 = vpack.c.b16 %v181, %v180
  %v238 = vpack.c.b16 %v183, %v182
  %v239 = vpack.c.b16 %v185, %v184
  %v240 = vpack.c.b16 %v187, %v186
  %v241 = vpack.c.b16 %v189, %v188
  %v242 = vpack.c.b16 %v191, %v190
  %v243 = vpack.c.b16 %v193, %v192
  %v244 = vpack.c.b16 %v195, %v194
  %v245 = vpack.c.b16 %v197, %v196
  %v246 = vpack.c.b16 %v199, %v198
  %v247 = vpack.c.b16 %v201, %v200
  %v248 = vpack.c.b16 %v203, %v202
  %v249 = vpack.c.b16 %v205, %v204
  %v250 = vpack.c.b16 %v207, %v206
  %v251 = vpack.c.b16 %v209, %v208
  %v252 = vpack.c.b16 %v211, %v210
  %v253 = vpack.c.b16 %v213, %v212
  %v254 = vpack.c.b16 %v215, %v214
  %v255 = vpack.c.b16 %v217, %v216
  %v256 = vpack.c.b16 %v219, %v218
  %v257 = vpack.c.b16 %v221, %v220
  %v258 = vpack.c.b16 %v223, %v222
  %v259 = vpack.c.b16 %v225, %v224
  %v260 = vpack.c.b16 %v227, %v226
  %v261 = vpack.c.b16 %v229, %v228
  %294 = vmatpush.bf16.msra.mxu0 %v237
  %295 = vmatpush.bf16.msra.mxu0 %v236
  %296 = vmatpush.bf16.msra.mxu0 %v235
  %297 = vmatpush.bf16.msra.mxu0 %v234
  %298 = vmatpush.bf16.msra.mxu0 %v233
  %299 = vmatpush.bf16.msra.mxu0 %v232
  %300 = vmatpush.bf16.msra.mxu0 %v231
  %301 = vmatpush.bf16.msra.mxu0 %v230
  %302 = vmatmul.bf16.gmra.mxu0 %v94
  %v303 = vpop.f32.mrf.mxu0
  %v304 = vadd.f32 0.0, %v303
  %v305 = vpop.f32.mrf.mxu0
  %v306 = vadd.f32 0.0, %v305
  %307 = vdwg.mxu0
  %308 = vmatpush.bf16.msra.mxu0 %v245
  %309 = vmatpush.bf16.msra.mxu0 %v244
  %310 = vmatpush.bf16.msra.mxu0 %v243
  %311 = vmatpush.bf16.msra.mxu0 %v242
  %312 = vmatpush.bf16.msra.mxu0 %v241
  %313 = vmatpush.bf16.msra.mxu0 %v240
  %314 = vmatpush.bf16.msra.mxu0 %v239
  %315 = vmatpush.bf16.msra.mxu0 %v238
  %316 = vmatmul.bf16.gmra.mxu0 %v95
  %v317 = vpop.f32.mrf.mxu0
  %v318 = vadd.f32 %v304, %v317
  %v319 = vpop.f32.mrf.mxu0
  %v320 = vadd.f32 %v306, %v319
  %321 = vdwg.mxu0
  %322 = vmatpush.bf16.msra.mxu0 %v253
  %323 = vmatpush.bf16.msra.mxu0 %v252
  %324 = vmatpush.bf16.msra.mxu0 %v251
  %325 = vmatpush.bf16.msra.mxu0 %v250
  %326 = vmatpush.bf16.msra.mxu0 %v249
  %327 = vmatpush.bf16.msra.mxu0 %v248
  %328 = vmatpush.bf16.msra.mxu0 %v247
  %329 = vmatpush.bf16.msra.mxu0 %v246
  %330 = vmatmul.bf16.gmra.mxu0 %v96
  %v331 = vpop.f32.mrf.mxu0
  %v332 = vadd.f32 %v318, %v331
  %v333 = vpop.f32.mrf.mxu0
  %v334 = vadd.f32 %v320, %v333
  %335 = vdwg.mxu0
  %336 = vmatpush.bf16.msra.mxu0 %v261
  %337 = vmatpush.bf16.msra.mxu0 %v260
  %338 = vmatpush.bf16.msra.mxu0 %v259
  %339 = vmatpush.bf16.msra.mxu0 %v258
  %340 = vmatpush.bf16.msra.mxu0 %v257
  %341 = vmatpush.bf16.msra.mxu0 %v256
  %342 = vmatpush.bf16.msra.mxu0 %v255
  %343 = vmatpush.bf16.msra.mxu0 %v254
  %344 = vmatmul.bf16.gmra.mxu0 %v97
  %v345 = vpop.f32.mrf.mxu0
  %v346 = vadd.f32 %v332, %v345
  %v347 = vpop.f32.mrf.mxu0
  %v348 = vadd.f32 %v334, %v347
  %349 = vdwg.mxu0
  %v350 = vpack.c.bf16 %v346, %v346
  %v351 = vpack.c.bf16 %v348, %v348
  %352 = vst [vmem:[%s2] sm:$0xf] %v350
  %353 = vst [vmem:[%s2 + $0x4] sm:$0xf] %v351
  %v354 = vadd.f32 %v346, %v348
  %v355 = vrot.slane %v354, 4
  %v356 = vadd.f32 %v354, %v355
  %v357 = vrot.slane %v356, 2
  %v358 = vadd.f32 %v356, %v357
  %v359 = vrot.slane %v358, 1
  %v360 = vadd.f32 %v358, %v359
  %v361 = vmul.f32 %v346, %v346
  %v362 = vmul.f32 %v348, %v348
  %v363 = vadd.f32 %v361, %v362
  %v364 = vrot.slane %v363, 4
  %v365 = vadd.f32 %v363, %v364
  %v366 = vrot.slane %v365, 2
  %v367 = vadd.f32 %v365, %v366
  %v368 = vrot.slane %v367, 1
  %v369 = vadd.f32 %v367, %v368
  %v370 = vlaneseq
  %v371 = vshrl.u32 %v370, 7
  %vm372 = vcmp.eq.s32.totalorder %v371, 0
  %v373 = vsel %vm372, %v360, 0.0
  %v374 = vsel %vm372, %v369, 0.0
  %375 = vst [vmem:[%s3] sm:$0xff] %v373
  %376 = vst [vmem:[%s4] sm:$0xff] %v374
  // Predicated region
  $region10: #{discriminator_forward.12} parent=0 // pred_check
    _
  $region11: #{discriminator_forward.12} parent=0 // pred_check_branch
    %378 = sbr.rel (0) target = $region13
  $region12: #{discriminator_forward.12} parent=0 // pred_region
    _
  $region13: #{discriminator_forward.12} parent=0 // pred_fallthru
    _
  // Predicated region
  $region14: #{discriminator_forward.12} parent=0 // pred_check
    _
  $region15: #{discriminator_forward.12} parent=0 // pred_check_branch
    %380 = sbr.rel (0) target = $region17
  $region16: #{discriminator_forward.12} parent=0 // pred_region
    _
  $region17: #{discriminator_forward.12} parent=0 // pred_fallthru
    _
  // Predicated region
  $region18: #{discriminator_forward.12} parent=0 // pred_check
    _
  $region19: #{discriminator_forward.12} parent=0 // pred_check_branch
    %382 = sbr.rel (0) target = $region21
  $region20: #{discriminator_forward.12} parent=0 // pred_region
    _
  $region21: #{discriminator_forward.12} parent=0 // pred_fallthru
    _
  // Predicated region
  $region22: #{discriminator_forward.12} parent=0 // pred_check
    _
  $region23: #{discriminator_forward.12} parent=0 // pred_check_branch
    %384 = sbr.rel (0) target = $region25
  $region24: #{discriminator_forward.12} parent=0 // pred_region
    _
  $region25: #{discriminator_forward.12} parent=0 // pred_fallthru
    _
  // Predicated region
  $region26: #{discriminator_forward.12} parent=0 // pred_check
    _
  $region27: #{discriminator_forward.12} parent=0 // pred_check_branch
    %386 = sbr.rel (0) target = $region29
  $region28: #{discriminator_forward.12} parent=0 // pred_region
    _
  $region29: #{discriminator_forward.12} parent=0 // pred_fallthru
    _
  // Predicated region
  $region30: #{discriminator_forward.12} parent=0 // pred_check
    _
  $region31: #{discriminator_forward.12} parent=0 // pred_check_branch
    %388 = sbr.rel (0) target = $region33
  $region32: #{discriminator_forward.12} parent=0 // pred_region
    _
  $region33: #{discriminator_forward.12} parent=0 // pred_fallthru
    _

</llo_original>
